<compile_context>
chip_gen: v7x
topology: tpu7x:2x2x1
jax: 0.10.0
libtpu: 0.0.40
codegen_flags: <defaults>
</compile_context>

<pallas_src>
import functools
import math

import jax
import jax.numpy as jnp
from jax.experimental import pallas as pl
from jax.experimental.pallas import tpu as pltpu

# Full-f32 matmul precision so the pure-JAX reference matches the in-kernel
# (MXU, f32-accumulated) math in "exact" mode.
jax.config.update("jax_default_matmul_precision", "highest")


def _largest_divisor_leq(n, cap):
    for d in range(min(n, cap), 0, -1):
        if n % d == 0:
            return d
    return 1


# ---------------------------------------------------------------------------
# MLP3 (clinical conditioning) — runs once per forward.
# ---------------------------------------------------------------------------
def mlp3_kernel(x_ref, w1_ref, b1_ref, w2_ref, b2_ref, w3_ref, b3_ref, o_ref,
                *, compute_dtype):
    cdt = compute_dtype
    x = x_ref[...].astype(cdt)
    h1 = jnp.maximum(
        jnp.dot(x, w1_ref[...], preferred_element_type=jnp.float32) + b1_ref[...], 0.0)
    # TODO(synk): dropout with do_prob > 0 not implemented (p=0.0 default == identity).
    h2 = jnp.maximum(
        jnp.dot(h1.astype(cdt), w2_ref[...], preferred_element_type=jnp.float32)
        + b2_ref[...], 0.0)
    o = jnp.dot(h2.astype(cdt), w3_ref[...], preferred_element_type=jnp.float32) + b3_ref[...]
    o_ref[...] = o.astype(o_ref.dtype)


def mlp3_forward(x, prepared_params, *, compute_dtype=jnp.float32, batch_tile=256):
    """x: [B, n_in]; prepared_params already in [in, out] / [1, out] layout (f32)."""
    w1, b1, w2, b2, w3, b3 = prepared_params
    B, n_in = x.shape
    n_out = w3.shape[1]
    # Weights cast once to the MXU dtype; biases stay f32 (VPU adds).
    ws = [w1.astype(compute_dtype), b1, w2.astype(compute_dtype), b2,
          w3.astype(compute_dtype), b3]
    tb = B if B <= batch_tile else batch_tile  # production: pad B to a multiple of tb
    grid = (pl.cdiv(B, tb),)

    def resident(arr):
        nd = arr.ndim
        return pl.BlockSpec(arr.shape, lambda *_: (0,) * nd)

    in_specs = [pl.BlockSpec((tb, n_in), lambda i: (i, 0))] + [resident(p) for p in ws]
    out_specs = pl.BlockSpec((tb, n_out), lambda i: (i, 0))

    flops = 2 * B * (n_in * w1.shape[1] + w1.shape[1] * w2.shape[1] + w2.shape[1] * n_out)
    bytes_acc = (4 * (int(x.size) + B * n_out)
                 + sum(int(p.size) * p.dtype.itemsize for p in ws))

    return pl.pallas_call(
        functools.partial(mlp3_kernel, compute_dtype=compute_dtype),
        out_shape=jax.ShapeDtypeStruct((B, n_out), x.dtype),
        grid=grid,
        in_specs=in_specs,
        out_specs=out_specs,
        compiler_params=pltpu.CompilerParams(
            dimension_semantics=("parallel",),
            vmem_limit_bytes=32 * 1024 * 1024),
        cost_estimate=pl.CostEstimate(flops=int(flops), transcendentals=0,
                                      bytes_accessed=int(bytes_acc)),
    )(x, *ws)


# ---------------------------------------------------------------------------
# RNNDecoder recurrent kernel: one grid step == one (batch tile, time block).
# ---------------------------------------------------------------------------
def rnn_decoder_kernel(
        x0_ref, h0_ref, cln_ref, rtype_ref,
        rel_rec_ref, rel_send_ref, rel_recT_ref,
        w_m1r_ref, w_m1s_ref, b_m1_ref, w_m2_ref, b_m2_ref,
        w_in_ref, b_in_ref, w_h_ref, b_h_ref,
        w_o1_ref, b_o1_ref, w_o2_ref, b_o2_ref, w_o3_ref, b_o3_ref,
        pred_ref, x_scr, h_scr,
        *, cond_msgs, compute_dtype, approx_sigmoid):
    cdt = compute_dtype
    H = h_scr.shape[-1]
    n_feat = x_scr.shape[-1]
    n_used = w_m2_ref.shape[0]
    time_block = pred_ref.shape[-1] // n_feat

    def mm(a, w):
        # MXU matmul: operands in compute dtype (bf16 in "fast" mode), f32 accumulate.
        return jnp.dot(a.astype(cdt), w, preferred_element_type=jnp.float32)

    def sigmoid(v):
        e = jnp.exp(-v)
        if approx_sigmoid:
            return pl.reciprocal(1.0 + e, approx=True)   # EUP rcp -> frees VALU slots
        return 1.0 / (1.0 + e)

    # Prime the carried state (autoregressive input + GRU hidden) at the first
    # time block of each batch tile.
    @pl.when(pl.program_id(1) == 0)
    def _init():
        x_scr[...] = x0_ref[...]
        h_scr[...] = h0_ref[...]

    x = x_scr[...]                     # [tb*A, n_in]  f32 carry
    h = h_scr[...]                     # [tb*A, H]     f32 carry

    rel_rec = rel_rec_ref[...]         # [tb*E, tb*A]  block-diag over the batch tile
    rel_send = rel_send_ref[...]       # [tb*E, tb*A]
    rel_recT = rel_recT_ref[...]       # [tb*A, tb*E]  pre-scaled by 1/n_in
    rtype = rtype_ref[...]             # [tb*E, n_used]  pre-scaled by 1/norm
    cln = cln_ref[...]                 # [tb*A, H]

    w_m1r = w_m1r_ref[...]             # [H, n_used*H]  (msg_fc1, recv half, all edge types)
    w_m1s = w_m1s_ref[...]             # [H, n_used*H]  (msg_fc1, send half)
    b_m1 = b_m1_ref[...]               # [1, n_used*H]
    w_in = w_in_ref[...]               # [n_in, 3H]  ([in_r | in_z | in_n])
    b_in = b_in_ref[...]
    w_h = w_h_ref[...]                 # [H, 2H]     ([hr | hn]; hz is unused in forward())
    b_h = b_h_ref[...]
    w_o1 = w_o1_ref[...]; b_o1 = b_o1_ref[...]
    w_o2 = w_o2_ref[...]; b_o2 = b_o2_ref[...]
    w_o3 = w_o3_ref[...]; b_o3 = b_o3_ref[...]

    # Statically unrolled time block (time_block is small; the grid's "arbitrary"
    # time axis supplies the remaining sequential steps).
    for lt in range(time_block):
        hc = h.astype(cdt)
        # node2edge gather via block-diagonal relation matrices (single 2-D matmuls).
        recv = jnp.dot(rel_rec, hc, preferred_element_type=jnp.float32)    # [tbE, H]
        send = jnp.dot(rel_send, hc, preferred_element_type=jnp.float32)   # [tbE, H]
        # msg_fc1 for all (used) edge types fused into one matmul pair
        # (concat-free split of cat([recv, send], -1)).
        m1 = jnp.tanh(mm(recv, w_m1r) + mm(send, w_m1s) + b_m1)            # [tbE, nu*H]
        # TODO(synk): dropout with do_prob > 0 not implemented (p=0.0 default == identity).
        all_msgs = jnp.zeros((recv.shape[0], H), jnp.float32)
        for i in range(n_used):
            m2 = jnp.tanh(mm(m1[:, i * H:(i + 1) * H], w_m2_ref[i]) + b_m2_ref[i])
            all_msgs = all_msgs + m2 * rtype[:, i:i + 1]   # rtype pre-scaled by 1/norm

        # edge2node aggregation; 1/n_in folded into rel_recT.
        agg = jnp.dot(rel_recT, all_msgs.astype(cdt),
                      preferred_element_type=jnp.float32)                  # [tbA, H]
        if cond_msgs:
            agg = agg + cln

        gx = mm(x, w_in) + b_in        # [tbA, 3H]: [in_r(x) | in_z(x) | in_n(x)]
        gh = mm(agg, w_h) + b_h        # [tbA, 2H]: [hr(agg) | hn(agg)]
        hr = gh[:, :H]
        hn = gh[:, H:]
        # Faithful to the reference module: both r and z use hr() (hz exists but is unused).
        r = sigmoid(gx[:, :H] + hr)
        z = sigmoid(gx[:, H:2 * H] + hr)
        cand = jnp.tanh(gx[:, 2 * H:] + r * hn)
        h = (1.0 - z) * cand + z * h                                       # [tbA, H]

        p = jnp.maximum(mm(h, w_o1) + b_o1, 0.0)
        p = jnp.maximum(mm(p, w_o2) + b_o2, 0.0)
        p = mm(p, w_o3) + b_o3
        x = x + p                                                          # [tbA, n_in]

        pred_ref[:, lt * n_feat:(lt + 1) * n_feat] = x.astype(pred_ref.dtype)

    x_scr[...] = x
    h_scr[...] = h


def rnn_decoder_forward(data, rel_type, rel_rec, rel_send, clinical, params, *,
                        cond_hidden, cond_msgs, skip_first,
                        precision="fast", batch_tiles=None, max_time_block=8):
    """data: [B, n_atoms, T, n_in_node] -> predictions [B, n_atoms, T, n_in_node]."""
    B, A, T, n_in = data.shape
    if T < 2:
        raise ValueError("need at least 2 time steps")
    H = params['w_h_cat'].shape[0]
    E = rel_rec.shape[0]
    ET = rel_type.shape[2]
    n_steps = T - 1
    start_idx = 1 if skip_first else 0
    n_used = ET - start_idx
    if n_used <= 0:
        raise ValueError("skip_first=True with edge_types==1: the reference module "
                         "divides by norm==0; not supported.")
    if params['w_msg2'].shape[0] != n_used:
        raise ValueError("params were prepared with a different skip_first / edge_types")

    fast = (precision == "fast")
    cdt = jnp.bfloat16 if fast else jnp.float32   # MXU-operand dtype only; state stays f32

    # ---- batch / time tiling -------------------------------------------------
    if batch_tiles is None:
        # v7x has 2 TensorCores: give the parallel axis >=2 tiles when B allows it.
        batch_tiles = 2 if (B >= 2 and B % 2 == 0) else 1
    if B % batch_tiles != 0:
        batch_tiles = 1
    tb = B // batch_tiles
    Tt = _largest_divisor_leq(n_steps, max_time_block)   # time steps per grid step
    n_tblk = n_steps // Tt
    tbA, tbE = tb * A, tb * E

    # ---- one-off per-call operand prep (tiny; hoisted out of the kernel) -----
    x0 = data[:, :, 0, :].astype(jnp.float32).reshape(batch_tiles, tbA, n_in)

    if cond_hidden:
        h0 = mlp3_forward(clinical, params['clinical_mlp'],
                          compute_dtype=cdt).reshape(batch_tiles, tbA, H)
    else:
        h0 = jnp.zeros((batch_tiles, tbA, H), jnp.float32)
    if cond_msgs:
        # clinical is time-invariant (dropout identity at p=0): the per-step
        # clinical2msg_mlp call is hoisted to run once per forward.
        cln = mlp3_forward(clinical, params['clinical2msg_mlp'],
                           compute_dtype=cdt).reshape(batch_tiles, tbA, H)
    else:
        cln = jnp.zeros((batch_tiles, tbA, H), jnp.float32)

    inv_norm = 1.0 / float(n_used)
    rtype = (rel_type[:, :, start_idx:].astype(jnp.float32) * inv_norm
             ).reshape(batch_tiles, tbE, n_used)          # 1/norm folded in

    eye_tb = jnp.eye(tb, dtype=jnp.float32)
    rel_rec_bd = jnp.kron(eye_tb, rel_rec.astype(jnp.float32)).astype(cdt)    # [tbE, tbA]
    rel_send_bd = jnp.kron(eye_tb, rel_send.astype(jnp.float32)).astype(cdt)  # [tbE, tbA]
    rel_recT_bd = (jnp.kron(eye_tb, rel_rec.T.astype(jnp.float32))
                   / float(n_in)).astype(cdt)                                  # [tbA, tbE], 1/n_in folded

    def wcast(k):
        return params[k].astype(cdt)

    weights = [
        wcast('w_msg1_recv_cat'), wcast('w_msg1_send_cat'), params['b_msg1_cat'],
        wcast('w_msg2'), params['b_msg2'],
        wcast('w_in_cat'), params['b_in_cat'],
        wcast('w_h_cat'), params['b_h_cat'],
        wcast('w_out_fc1'), params['b_out_fc1'],
        wcast('w_out_fc2'), params['b_out_fc2'],
        wcast('w_out_fc3'), params['b_out_fc3'],
    ]
    args = [x0, h0, cln, rtype, rel_rec_bd, rel_send_bd, rel_recT_bd] + weights

    # ---- specs ---------------------------------------------------------------
    def per_tile(arr):
        _, r, c = arr.shape
        return pl.BlockSpec((None, r, c), lambda b, t: (b, 0, 0))

    def resident(arr):
        nd = arr.ndim
        return pl.BlockSpec(arr.shape, lambda *_: (0,) * nd)

    in_specs = ([per_tile(x0), per_tile(h0), per_tile(cln), per_tile(rtype)]
                + [resident(a) for a in (rel_rec_bd, rel_send_bd, rel_recT_bd)]
                + [resident(w) for w in weights])

    # Lane-flattened per-time-block output slab (tb*A, Tt*n_in); at production sizes
    # pad the last dim to a multiple of 128 for unmasked stores.
    out_shape = jax.ShapeDtypeStruct((batch_tiles, n_tblk, tbA, Tt * n_in), data.dtype)
    out_specs = pl.BlockSpec((None, None, tbA, Tt * n_in), lambda b, t: (b, t, 0, 0))

    grid = (batch_tiles, n_tblk)

    # ---- advisory cost estimate ----------------------------------------------
    flops_step_tile = (
        2 * 2 * tbE * tbA * H              # node2edge recv/send
        + 2 * 2 * tbE * H * (n_used * H)   # fused msg_fc1 (recv + send halves)
        + n_used * 2 * tbE * H * H         # msg_fc2
        + 2 * tbA * tbE * H                # edge2node aggregation
        + 2 * tbA * n_in * 3 * H           # GRU input gates (fused)
        + 2 * tbA * H * 2 * H              # GRU hidden gates (fused)
        + 2 * 2 * tbA * H * H              # out_fc1 / out_fc2
        + 2 * tbA * H * n_in)              # out_fc3
    transc_step_tile = 2 * n_used * tbE * H + 5 * tbA * H
    total_flops = batch_tiles * n_steps * flops_step_tile
    total_transc = batch_tiles * n_steps * transc_step_tile
    bytes_acc = (sum(int(a.size) * a.dtype.itemsize for a in args)
                 + 4 * B * n_steps * A * n_in)

    kernel = functools.partial(rnn_decoder_kernel,
                               cond_msgs=cond_msgs,
                               compute_dtype=cdt,
                               approx_sigmoid=fast)
    preds = pl.pallas_call(
        kernel,
        out_shape=out_shape,
        grid=grid,
        in_specs=in_specs,
        out_specs=out_specs,
        scratch_shapes=[pltpu.VMEM((tbA, n_in), jnp.float32),   # autoregressive input carry
                        pltpu.VMEM((tbA, H), jnp.float32)],     # GRU hidden-state carry
        compiler_params=pltpu.CompilerParams(
            dimension_semantics=("parallel", "arbitrary"),
            vmem_limit_bytes=48 * 1024 * 1024),
        cost_estimate=pl.CostEstimate(flops=int(total_flops),
                                      transcendentals=int(total_transc),
                                      bytes_accessed=int(bytes_acc)),
    )(*args)

    # (batch_tiles, n_tblk, tb*A, Tt*n_in) -> (B, A, n_steps, n_in)
    preds = preds.reshape(batch_tiles, n_tblk, tb, A, Tt, n_in)
    preds = jnp.transpose(preds, (0, 2, 3, 1, 4, 5)).reshape(B, A, n_steps, n_in)
    return jnp.concatenate([data[:, :, :1, :], preds], axis=2)   # prepend the first frame


# ---------------------------------------------------------------------------
# Parameter init (PyTorch nn.Linear style) + one-time layout/fusion preparation.
# ---------------------------------------------------------------------------
def init_linear(key, n_in, n_out):
    kw, kb = jax.random.split(key)
    bound = 1.0 / math.sqrt(n_in)
    w = jax.random.uniform(kw, (n_out, n_in), jnp.float32, -bound, bound)
    b = jax.random.uniform(kb, (n_out,), jnp.float32, -bound, bound)
    return w, b


def init_decoder_params(key, n_in_node, n_atoms, n_clinical, edge_types, n_hid,
                        cond_hidden, cond_msgs):
    keys = iter(jax.random.split(key, 64))
    raw = {}
    raw['msg_fc1'] = [init_linear(next(keys), 2 * n_hid, n_hid) for _ in range(edge_types)]
    raw['msg_fc2'] = [init_linear(next(keys), n_hid, n_hid) for _ in range(edge_types)]
    if cond_hidden:
        raw['clinical_mlp'] = (init_linear(next(keys), n_clinical, n_hid)
                               + init_linear(next(keys), n_hid, 2 * n_hid)
                               + init_linear(next(keys), 2 * n_hid, n_atoms * n_hid))
    if cond_msgs:
        raw['clinical2msg_mlp'] = (init_linear(next(keys), n_clinical, n_hid)
                                   + init_linear(next(keys), n_hid, 2 * n_hid)
                                   + init_linear(next(keys), 2 * n_hid, n_atoms * n_hid))
    raw['in_r'] = init_linear(next(keys), n_in_node, n_hid)
    raw['in_z'] = init_linear(next(keys), n_in_node, n_hid)
    raw['in_n'] = init_linear(next(keys), n_in_node, n_hid)
    raw['hr'] = init_linear(next(keys), n_hid, n_hid)
    # NOTE: the PyTorch module also creates self.hz, but forward() never uses it.
    raw['hn'] = init_linear(next(keys), n_hid, n_hid)
    raw['out_fc1'] = init_linear(next(keys), n_hid, n_hid)
    raw['out_fc2'] = init_linear(next(keys), n_hid, n_hid)
    raw['out_fc3'] = init_linear(next(keys), n_hid, n_in_node)
    return raw


def _prep_linear(w, b):
    # One-time layout prep: weight [out, in] -> [in, out], bias -> [1, out].
    return w.T, b.reshape(1, -1)


def prepare_decoder_params(raw, cond_hidden, cond_msgs, skip_first):
    """One-time prep: transpose to [in,out], fuse small matmuls, drop skipped edge types."""
    n_hid = raw['hr'][0].shape[0]
    edge_types = len(raw['msg_fc2'])
    start_idx = 1 if skip_first else 0
    if edge_types - start_idx <= 0:
        raise ValueError("skip_first=True with edge_types==1: the reference module "
                         "divides by norm==0; not supported.")
    used = list(range(start_idx, edge_types))
    p = {}
    w1t = [raw['msg_fc1'][i][0].T for i in used]                               # each [2H, H]
    p['w_msg1_recv_cat'] = jnp.concatenate([w[:n_hid] for w in w1t], axis=1)   # [H, nu*H]
    p['w_msg1_send_cat'] = jnp.concatenate([w[n_hid:] for w in w1t], axis=1)   # [H, nu*H]
    p['b_msg1_cat'] = jnp.concatenate(
        [raw['msg_fc1'][i][1].reshape(1, -1) for i in used], axis=1)           # [1, nu*H]
    p['w_msg2'] = jnp.stack([raw['msg_fc2'][i][0].T for i in used])            # [nu, H, H]
    p['b_msg2'] = jnp.stack([raw['msg_fc2'][i][1].reshape(1, -1) for i in used])  # [nu, 1, H]
    # GRU input gates fused: [in_r | in_z | in_n] -> one (n_in, 3H) matmul.
    p['w_in_cat'] = jnp.concatenate([raw[k][0].T for k in ('in_r', 'in_z', 'in_n')], axis=1)
    p['b_in_cat'] = jnp.concatenate([raw[k][1].reshape(1, -1)
                                     for k in ('in_r', 'in_z', 'in_n')], axis=1)
    # GRU hidden gates fused: [hr | hn] (hz unused in forward()) -> one (H, 2H) matmul.
    p['w_h_cat'] = jnp.concatenate([raw[k][0].T for k in ('hr', 'hn')], axis=1)
    p['b_h_cat'] = jnp.concatenate([raw[k][1].reshape(1, -1) for k in ('hr', 'hn')], axis=1)
    for name in ('out_fc1', 'out_fc2', 'out_fc3'):
        w, b = _prep_linear(*raw[name])
        p['w_' + name] = w
        p['b_' + name] = b
    if cond_hidden:
        c = raw['clinical_mlp']
        p['clinical_mlp'] = (_prep_linear(c[0], c[1]) + _prep_linear(c[2], c[3])
                             + _prep_linear(c[4], c[5]))
    if cond_msgs:
        c = raw['clinical2msg_mlp']
        p['clinical2msg_mlp'] = (_prep_linear(c[0], c[1]) + _prep_linear(c[2], c[3])
                                 + _prep_linear(c[4], c[5]))
    return p


# ---------------------------------------------------------------------------
# Pure-JAX reference (mirrors the PyTorch module, incl. its hr-for-z quirk).
# ---------------------------------------------------------------------------
def _linear_ref(x, w, b):
    return x @ w.T + b


def mlp3_reference(x, raw):
    w1, b1, w2, b2, w3, b3 = raw
    h = jnp.maximum(_linear_ref(x, w1, b1), 0.0)
    h = jnp.maximum(_linear_ref(h, w2, b2), 0.0)
    return _linear_ref(h, w3, b3)


def rnn_decoder_reference(data, rel_type, rel_rec, rel_send, clinical, raw, *,
                          cond_hidden, cond_msgs, skip_first, n_hid):
    B, A, T, n_in = data.shape
    ET = len(raw['msg_fc2'])
    inputs = jnp.transpose(data, (0, 2, 1, 3))
    if cond_hidden:
        hidden = mlp3_reference(clinical, raw['clinical_mlp']).reshape(B, A, n_hid)
    else:
        hidden = jnp.zeros((B, A, n_hid), jnp.float32)
    start_idx = 1 if skip_first else 0
    norm = float(ET) - (1.0 if skip_first else 0.0)
    pred_all = [inputs[:, 0]]
    for _ in range(T - 1):
        x = pred_all[-1]
        receivers = jnp.einsum('ea,bah->beh', rel_rec, hidden)
        senders = jnp.einsum('ea,bah->beh', rel_send, hidden)
        pre_msg = jnp.concatenate([receivers, senders], axis=-1)
        all_msgs = jnp.zeros((B, rel_rec.shape[0], n_hid), jnp.float32)
        for i in range(start_idx, ET):
            w1, b1 = raw['msg_fc1'][i]
            w2, b2 = raw['msg_fc2'][i]
            msg = jnp.tanh(_linear_ref(pre_msg, w1, b1))
            msg = jnp.tanh(_linear_ref(msg, w2, b2))
            msg = msg * rel_type[:, :, i:i + 1]
            all_msgs = all_msgs + msg / norm
        agg = jnp.einsum('beh,ea->bah', all_msgs, rel_rec) / n_in
        if cond_msgs:
            cln = mlp3_reference(clinical, raw['clinical2msg_mlp']).reshape(B, A, n_hid)
            agg = agg + cln
        hr = _linear_ref(agg, *raw['hr'])
        r = jax.nn.sigmoid(_linear_ref(x, *raw['in_r']) + hr)
        z = jax.nn.sigmoid(_linear_ref(x, *raw['in_z']) + hr)
        n = jnp.tanh(_linear_ref(x, *raw['in_n']) + r * _linear_ref(agg, *raw['hn']))
        hidden = (1.0 - z) * n + z * hidden
        p = jnp.maximum(_linear_ref(hidden, *raw['out_fc1']), 0.0)
        p = jnp.maximum(_linear_ref(p, *raw['out_fc2']), 0.0)
        p = _linear_ref(p, *raw['out_fc3'])
        pred_all.append(x + p)
    predictions = jnp.stack(pred_all, axis=1)
    return jnp.transpose(predictions, (0, 2, 1, 3))


if __name__ == "__main__":
    B, A, T, N_IN = 2, 5, 8, 4          # batch, atoms, time steps, features per node
    H, ET, N_CLN = 32, 2, 8             # hidden, edge types, clinical features
    COND_HIDDEN, COND_MSGS, SKIP_FIRST = True, True, False

    key = jax.random.PRNGKey(0)
    k_data, k_rel, k_cln, k_par = jax.random.split(key, 4)

    data = jax.random.normal(k_data, (B, A, T, N_IN), jnp.float32)
    clinical = jax.random.normal(k_cln, (B, N_CLN), jnp.float32)

    # Fully-connected (no self-loop) relation graph, NRI-style one-hot matrices.
    pairs = [(i, j) for i in range(A) for j in range(A) if i != j]
    rel_rec = jax.nn.one_hot(jnp.array([p[0] for p in pairs]), A, dtype=jnp.float32)
    rel_send = jax.nn.one_hot(jnp.array([p[1] for p in pairs]), A, dtype=jnp.float32)
    E = len(pairs)
    rel_type = jax.nn.softmax(jax.random.normal(k_rel, (B, E, ET), jnp.float32), axis=-1)

    raw = init_decoder_params(k_par, N_IN, A, N_CLN, ET, H, COND_HIDDEN, COND_MSGS)
    params = prepare_decoder_params(raw, COND_HIDDEN, COND_MSGS, SKIP_FIRST)

    ref = rnn_decoder_reference(data, rel_type, rel_rec, rel_send, clinical, raw,
                                cond_hidden=COND_HIDDEN, cond_msgs=COND_MSGS,
                                skip_first=SKIP_FIRST, n_hid=H)

    # Exact path (f32 MXU operands, exact sigmoid): tight check vs the reference.
    out_exact = rnn_decoder_forward(data, rel_type, rel_rec, rel_send, clinical, params,
                                    cond_hidden=COND_HIDDEN, cond_msgs=COND_MSGS,
                                    skip_first=SKIP_FIRST, precision="exact")
    out_exact = jax.block_until_ready(out_exact)
    assert out_exact.shape == (B, A, T, N_IN), out_exact.shape
    err_exact = float(jnp.max(jnp.abs(out_exact - ref)))
    assert jnp.allclose(out_exact, ref, atol=5e-3, rtol=5e-3), \
        f"exact-path mismatch vs reference ({err_exact})"

    # Fast path (bf16 MXU operands + approx EUP reciprocal): loose check — the only
    # deviation is reduced-precision MXU inputs compounding over the 7-step recurrence.
    out_fast = rnn_decoder_forward(data, rel_type, rel_rec, rel_send, clinical, params,
                                   cond_hidden=COND_HIDDEN, cond_msgS=COND_MSGS,
                                   skip_first=SKIP_FIRST, precision="fast") \
        if False else \
        rnn_decoder_forward(data, rel_type, rel_rec, rel_send, clinical, params,
                            cond_hidden=COND_HIDDEN, cond_msgs=COND_MSGS,
                            skip_first=SKIP_FIRST, precision="fast")
    out_fast = jax.block_until_ready(out_fast)
    assert out_fast.shape == (B, A, T, N_IN), out_fast.shape
    assert bool(jnp.all(jnp.isfinite(out_fast)))
    err_fast = float(jnp.max(jnp.abs(out_fast - ref)))
    assert jnp.allclose(out_fast, ref, atol=2.5e-1, rtol=2.5e-1), \
        f"fast-path (bf16) drift too large vs reference ({err_fast})"

    print("KERNEL_OK")
</pallas_src>

<mosaic_0001>
module attributes {stable_mosaic.version = 11 : i64} {
  func.func @mlp3_kernel(%arg0: i32, %arg1: memref<2x8xf32, #tpu.memory_space<vmem>>, %arg2: memref<8x32xf32, #tpu.memory_space<vmem>>, %arg3: memref<1x32xf32, #tpu.memory_space<vmem>>, %arg4: memref<32x64xf32, #tpu.memory_space<vmem>>, %arg5: memref<1x64xf32, #tpu.memory_space<vmem>>, %arg6: memref<64x160xf32, #tpu.memory_space<vmem>>, %arg7: memref<1x160xf32, #tpu.memory_space<vmem>>, %arg8: memref<2x160xf32, #tpu.memory_space<vmem>>) attributes {dimension_semantics = [#tpu.dimension_semantics<parallel>], iteration_bounds = array<i64: 1>, scalar_prefetch = 0 : i64, scratch_operands = 0 : i64, tpu.core_type = #tpu.core_type<tc>, window_params = [{transform_indices = @transform_0, window_bounds = array<i64: 2, 8>}, {pipeline_mode = #tpu.pipeline_mode<synchronous>, transform_indices = @transform_1, window_bounds = array<i64: 8, 32>}, {pipeline_mode = #tpu.pipeline_mode<synchronous>, transform_indices = @transform_2, window_bounds = array<i64: 1, 32>}, {pipeline_mode = #tpu.pipeline_mode<synchronous>, transform_indices = @transform_3, window_bounds = array<i64: 32, 64>}, {pipeline_mode = #tpu.pipeline_mode<synchronous>, transform_indices = @transform_4, window_bounds = array<i64: 1, 64>}, {pipeline_mode = #tpu.pipeline_mode<synchronous>, transform_indices = @transform_5, window_bounds = array<i64: 64, 160>}, {pipeline_mode = #tpu.pipeline_mode<synchronous>, transform_indices = @transform_6, window_bounds = array<i64: 1, 160>}, {transform_indices = @transform_7, window_bounds = array<i64: 2, 160>}]} {
    %c0 = arith.constant 0 : index
    %c0_0 = arith.constant 0 : index
    %0 = vector.load %arg1[%c0, %c0_0] : memref<2x8xf32, #tpu.memory_space<vmem>>, vector<2x8xf32>
    %c0_1 = arith.constant 0 : index
    %c0_2 = arith.constant 0 : index
    %1 = vector.load %arg2[%c0_1, %c0_2] : memref<8x32xf32, #tpu.memory_space<vmem>>, vector<8x32xf32>
    %cst = arith.constant dense<0.000000e+00> : vector<2x32xf32>
    %2 = tpu.matmul %0, %1, %cst {dimension_numbers = #tpu.dot_dimension_numbers<[1], [0], [0], [1], [0, 0, 1, 1], [], []>, precision = #tpu.contract_precision<fp32>} : vector<2x8xf32>, vector<8x32xf32>, vector<2x32xf32> -> vector<2x32xf32>
    %c0_3 = arith.constant 0 : index
    %c0_4 = arith.constant 0 : index
    %3 = vector.load %arg3[%c0_3, %c0_4] : memref<1x32xf32, #tpu.memory_space<vmem>>, vector<1x32xf32>
    %4 = vector.broadcast %3 : vector<1x32xf32> to vector<2x32xf32>
    %5 = arith.addf %2, %4 : vector<2x32xf32>
    %cst_5 = arith.constant 0.000000e+00 : f32
    %6 = vector.broadcast %cst_5 : f32 to vector<2x32xf32>
    %7 = arith.maximumf %5, %6 : vector<2x32xf32>
    %c0_6 = arith.constant 0 : index
    %c0_7 = arith.constant 0 : index
    %8 = vector.load %arg4[%c0_6, %c0_7] : memref<32x64xf32, #tpu.memory_space<vmem>>, vector<32x64xf32>
    %cst_8 = arith.constant dense<0.000000e+00> : vector<2x64xf32>
    %9 = tpu.matmul %7, %8, %cst_8 {dimension_numbers = #tpu.dot_dimension_numbers<[1], [0], [0], [1], [0, 0, 1, 1], [], []>, precision = #tpu.contract_precision<fp32>} : vector<2x32xf32>, vector<32x64xf32>, vector<2x64xf32> -> vector<2x64xf32>
    %c0_9 = arith.constant 0 : index
    %c0_10 = arith.constant 0 : index
    %10 = vector.load %arg5[%c0_9, %c0_10] : memref<1x64xf32, #tpu.memory_space<vmem>>, vector<1x64xf32>
    %11 = vector.broadcast %10 : vector<1x64xf32> to vector<2x64xf32>
    %12 = arith.addf %9, %11 : vector<2x64xf32>
    %cst_11 = arith.constant 0.000000e+00 : f32
    %13 = vector.broadcast %cst_11 : f32 to vector<2x64xf32>
    %14 = arith.maximumf %12, %13 : vector<2x64xf32>
    %c0_12 = arith.constant 0 : index
    %c0_13 = arith.constant 0 : index
    %15 = vector.load %arg6[%c0_12, %c0_13] : memref<64x160xf32, #tpu.memory_space<vmem>>, vector<64x160xf32>
    %cst_14 = arith.constant dense<0.000000e+00> : vector<2x160xf32>
    %16 = tpu.matmul %14, %15, %cst_14 {dimension_numbers = #tpu.dot_dimension_numbers<[1], [0], [0], [1], [0, 0, 1, 1], [], []>, precision = #tpu.contract_precision<fp32>} : vector<2x64xf32>, vector<64x160xf32>, vector<2x160xf32> -> vector<2x160xf32>
    %c0_15 = arith.constant 0 : index
    %c0_16 = arith.constant 0 : index
    %17 = vector.load %arg7[%c0_15, %c0_16] : memref<1x160xf32, #tpu.memory_space<vmem>>, vector<1x160xf32>
    %18 = vector.broadcast %17 : vector<1x160xf32> to vector<2x160xf32>
    %19 = arith.addf %16, %18 : vector<2x160xf32>
    %c0_17 = arith.constant 0 : index
    %c0_18 = arith.constant 0 : index
    %20 = vector.load %arg8[%c0_17, %c0_18] : memref<2x160xf32, #tpu.memory_space<vmem>>, vector<2x160xf32>
    tpu.vector_store %arg8[%c0_17, %c0_18], %19 {strides = array<i32>} : memref<2x160xf32, #tpu.memory_space<vmem>>, vector<2x160xf32>,
    return
  }
  func.func @transform_0(%arg0: i32) -> (i32, i32) {
    %c0_i32 = arith.constant 0 : i32
    %c0_i32_0 = arith.constant 0 : i32
    return %arg0, %c0_i32 : i32, i32
  }
  func.func @transform_1(%arg0: i32) -> (i32, i32) {
    %c0_i32 = arith.constant 0 : i32
    %c0_i32_0 = arith.constant 0 : i32
    %c0_i32_1 = arith.constant 0 : i32
    return %c0_i32, %c0_i32_0 : i32, i32
  }
  func.func @transform_2(%arg0: i32) -> (i32, i32) {
    %c0_i32 = arith.constant 0 : i32
    %c0_i32_0 = arith.constant 0 : i32
    %c0_i32_1 = arith.constant 0 : i32
    return %c0_i32, %c0_i32_0 : i32, i32
  }
  func.func @transform_3(%arg0: i32) -> (i32, i32) {
    %c0_i32 = arith.constant 0 : i32
    %c0_i32_0 = arith.constant 0 : i32
    %c0_i32_1 = arith.constant 0 : i32
    return %c0_i32, %c0_i32_0 : i32, i32
  }
  func.func @transform_4(%arg0: i32) -> (i32, i32) {
    %c0_i32 = arith.constant 0 : i32
    %c0_i32_0 = arith.constant 0 : i32
    %c0_i32_1 = arith.constant 0 : i32
    return %c0_i32, %c0_i32_0 : i32, i32
  }
  func.func @transform_5(%arg0: i32) -> (i32, i32) {
    %c0_i32 = arith.constant 0 : i32
    %c0_i32_0 = arith.constant 0 : i32
    %c0_i32_1 = arith.constant 0 : i32
    return %c0_i32, %c0_i32_0 : i32, i32
  }
  func.func @transform_6(%arg0: i32) -> (i32, i32) {
    %c0_i32 = arith.constant 0 : i32
    %c0_i32_0 = arith.constant 0 : i32
    %c0_i32_1 = arith.constant 0 : i32
    return %c0_i32, %c0_i32_0 : i32, i32
  }
  func.func @transform_7(%arg0: i32) -> (i32, i32) {
    %c0_i32 = arith.constant 0 : i32
    %c0_i32_0 = arith.constant 0 : i32
    return %arg0, %c0_i32 : i32, i32
  }
}

</mosaic_0001>

<llo_original>
// kernel: tpu_custom_call.1
$region0: #{tpu_custom_call.1}
  #allocation0 [shape = 'u32[]', space=smem, size = 0x4, offset = 0x4, fixed_abs, tag = 'smem constant byte address 0x4 - core index']
  #allocation1 [shape = 'u32[144,128]{1,0:T(1,128)}', space=vmem, size = 0x12000, scoped, tag = 'internal scratch']
  %s0 = inlined_call_operand.hbm [shape: f32[2,8], index: 0, kind: input, shape index: {}]
  %s1 = inlined_call_operand.hbm [shape: f32[8,32], index: 1, kind: input, shape index: {}]
  %s2 = inlined_call_operand.vmem [shape: f32[1,32], index: 2, kind: input, shape index: {}]
  %s3 = inlined_call_operand.hbm [shape: f32[32,64], index: 3, kind: input, shape index: {}]
  %s4 = inlined_call_operand.vmem [shape: f32[1,64], index: 4, kind: input, shape index: {}]
  %s5 = inlined_call_operand.hbm [shape: f32[64,160], index: 5, kind: input, shape index: {}]
  %s6 = inlined_call_operand.vmem [shape: f32[1,160], index: 6, kind: input, shape index: {}]
  %s7 = inlined_call_operand.hbm [shape: f32[2,160], index: 7, kind: output, shape index: {}]
  %s8 = sld [smem:[#allocation0]]
  $region54: #{tpu_custom_call.1} parent=0
    _
  %s10 = ssub.s32 1, %s8
  %s11 = scalar_select 0, %s10, %s8
  $region1: #{tpu_custom_call.1} parent=0
    #allocation2 [shape = 'u8[1024]{0}', space=vmem, size = 0x400, scoped, tag = 'input window, operand 0, single buffered']
    #allocation3 [shape = 's32[1]{0}', space=sflag, size = 0x4, scoped, tag = 'scoped memory for tpu_custom_call.1']
    #allocation4 [shape = 's32[1]{0}', space=sflag, size = 0x4, scoped, tag = 'scoped memory for tpu_custom_call.1']
    #allocation5 [shape = 'u8[4096]{0}', space=vmem, size = 0x1000, scoped, tag = 'input window, operand 1, single buffered']
    #allocation6 [shape = 's32[1]{0}', space=sflag, size = 0x4, scoped, tag = 'scoped memory for tpu_custom_call.1']
    #allocation7 [shape = 'u8[16384]{0}', space=vmem, size = 0x4000, scoped, tag = 'input window, operand 3, single buffered']
    #allocation8 [shape = 'u8[65536]{0}', space=vmem, size = 0x10000, scoped, tag = 'input window, operand 5, single buffered']
    #allocation9 [shape = 's32[1]{0}', space=sflag, size = 0x4, scoped, tag = 'scoped memory for tpu_custom_call.1']
    #allocation10 [shape = 'u8[2048]{0}', space=vmem, size = 0x800, scoped, tag = 'output window, operand 0, single buffered']
    %12 = vsyncpa [#allocation3], 0
    %13 = vsyncpa [#allocation6], 0
    %14 = vsyncpa [#allocation9], 0
    %15 = vsyncpa [#allocation4], 0
    // Predicated region
    $region2: #{tpu_custom_call.1} parent=1 // pred_check
      _
    $region3: #{tpu_custom_call.1} parent=1 // pred_check_branch
      %17 = sbr.rel (0) target = $region5
    $region4: #{tpu_custom_call.1} parent=1 // pred_region
      %s19 = ssub.s32 32, 32
      %20 = vsyncadd [#allocation3], %s19
      %s22 = sshll.u32 [#allocation2], 4
      %s23 = int_to_ptr.vmem [resolvable:$true] %s22
      %25 = dma.hbm_to_vmem [thread:$0]  %s0, 32, %s23, [#allocation3]
    $region5: #{tpu_custom_call.1} parent=1 // pred_fallthru
      _
    // Predicated region
    $region6: #{tpu_custom_call.1} parent=1 // pred_check
      _
    $region7: #{tpu_custom_call.1} parent=1 // pred_check_branch
      %27 = sbr.rel (0) target = $region9
    $region8: #{tpu_custom_call.1} parent=1 // pred_region
      %s29 = ssub.s32 128, 128
      %30 = vsyncadd [#allocation6], %s29
      %s32 = sshll.u32 [#allocation5], 4
      %s33 = int_to_ptr.vmem [resolvable:$true] %s32
      %35 = dma.hbm_to_vmem [thread:$0]  %s1, 128, %s33, [#allocation6]
    $region9: #{tpu_custom_call.1} parent=1 // pred_fallthru
      _
    // Predicated region
    $region10: #{tpu_custom_call.1} parent=1 // pred_check
      _
    $region11: #{tpu_custom_call.1} parent=1 // pred_check_branch
      %37 = sbr.rel (0) target = $region13
    $region12: #{tpu_custom_call.1} parent=1 // pred_region
      _
    $region13: #{tpu_custom_call.1} parent=1 // pred_fallthru
      _
    // Predicated region
    $region14: #{tpu_custom_call.1} parent=1 // pred_check
      _
    $region15: #{tpu_custom_call.1} parent=1 // pred_check_branch
      %39 = sbr.rel (0) target = $region17
    $region16: #{tpu_custom_call.1} parent=1 // pred_region
      %s41 = ssub.s32 512, 512
      %42 = vsyncadd [#allocation6], %s41
      %s43 = sshll.u32 [#allocation7], 4
      %s44 = int_to_ptr.vmem [resolvable:$true] %s43
      %49 = dma.hbm_to_vmem [thread:$0]  %s3, 512, %s44, [#allocation6], 128, 128, 8
    $region17: #{tpu_custom_call.1} parent=1 // pred_fallthru
      _
    // Predicated region
    $region18: #{tpu_custom_call.1} parent=1 // pred_check
      _
    $region19: #{tpu_custom_call.1} parent=1 // pred_check_branch
      %51 = sbr.rel (0) target = $region21
    $region20: #{tpu_custom_call.1} parent=1 // pred_region
      _
    $region21: #{tpu_custom_call.1} parent=1 // pred_fallthru
      _
    // Predicated region
    $region22: #{tpu_custom_call.1} parent=1 // pred_check
      _
    $region23: #{tpu_custom_call.1} parent=1 // pred_check_branch
      %53 = sbr.rel (0) target = $region25
    $region24: #{tpu_custom_call.1} parent=1 // pred_region
      %s55 = ssub.s32 2048, 2048
      %56 = vsyncadd [#allocation9], %s55
      %s57 = sshll.u32 [#allocation8], 4
      %s58 = int_to_ptr.vmem [resolvable:$true] %s57
      %63 = dma.hbm_to_vmem [thread:$0]  %s5, 2048, %s58, [#allocation9], 256, 256, 16
    $region25: #{tpu_custom_call.1} parent=1 // pred_fallthru
      _
    // Predicated region
    $region26: #{tpu_custom_call.1} parent=1 // pred_check
      _
    $region27: #{tpu_custom_call.1} parent=1 // pred_check_branch
      %65 = sbr.rel (0) target = $region29
    $region28: #{tpu_custom_call.1} parent=1 // pred_region
      _
    $region29: #{tpu_custom_call.1} parent=1 // pred_fallthru
      _
    // Predicated region
    $region30: #{tpu_custom_call.1} parent=1 // pred_check
      _
    $region31: #{tpu_custom_call.1} parent=1 // pred_check_branch
      %67 = sbr.rel (0) target = $region33
    $region32: #{tpu_custom_call.1} parent=1 // pred_region
      %68 = dma.done [#allocation3], 32
    $region33: #{tpu_custom_call.1} parent=1 // pred_fallthru
      _
    // Predicated region
    $region34: #{tpu_custom_call.1} parent=1 // pred_check
      _
    $region35: #{tpu_custom_call.1} parent=1 // pred_check_branch
      %70 = sbr.rel (0) target = $region37
    $region36: #{tpu_custom_call.1} parent=1 // pred_region
      %71 = dma.done [#allocation6], 128
    $region37: #{tpu_custom_call.1} parent=1 // pred_fallthru
      _
    // Predicated region
    $region38: #{tpu_custom_call.1} parent=1 // pred_check
      _
    $region39: #{tpu_custom_call.1} parent=1 // pred_check_branch
      %73 = sbr.rel (0) target = $region41
    $region40: #{tpu_custom_call.1} parent=1 // pred_region
      %74 = dma.done [#allocation6], 512
    $region41: #{tpu_custom_call.1} parent=1 // pred_fallthru
      _
    // Predicated region
    $region42: #{tpu_custom_call.1} parent=1 // pred_check
      _
    $region43: #{tpu_custom_call.1} parent=1 // pred_check_branch
      %76 = sbr.rel (0) target = $region45
    $region44: #{tpu_custom_call.1} parent=1 // pred_region
      %77 = dma.done [#allocation9], 2048
    $region45: #{tpu_custom_call.1} parent=1 // pred_fallthru
      _
    %v78 = vld [vmem:[#allocation2] sm:$0x3]
    %v79 = vld [vmem:[#allocation5] sm:$0xff]
    %v80 = vld [vmem:[%s2] sm:$0x1]
    %v82 = vlaneseq
    %v83 = vshrl.u32 %v82, 7
    %v84 = vsub.s32 0, %v83
    %v85 = vrot.slane %v80, %v84
    %vm87 = vcmask 64512
    %v89 = vsel %vm87, %v78, 0
    %91 = vmatprep.subr.mxu0 0.0
    %v92 = vand.u32 %v79, 4294901760
    %93 = vmatpush1.msra.mxu0 %v92
    %94 = vmatprep.subr.mxu0 0.0
    %95 = vmatpush1.msra.mxu0 0.0
    %96 = vmatprep.subr.mxu0 0.0
    %97 = vmatpush1.msra.mxu0 0.0
    %98 = vmatprep.subr.mxu0 0.0
    %99 = vmatpush1.msra.mxu0 0.0
    %100 = vmatprep.subr.mxu0 0.0
    %101 = vmatpush1.msra.mxu0 0.0
    %102 = vmatprep.subr.mxu0 0.0
    %103 = vmatpush1.msra.mxu0 0.0
    %104 = vmatprep.subr.mxu0 0.0
    %105 = vmatpush1.msra.mxu0 0.0
    %106 = vmatprep.subr.mxu0 0.0
    %107 = vmatpush1.msra.mxu0 0.0
    %108 = vmatprep.subr.mxu0 0.0
    %109 = vmatpush1.msra.mxu0 0.0
    %110 = vmatprep.subr.mxu0 0.0
    %111 = vmatpush1.msra.mxu0 0.0
    %112 = vmatprep.subr.mxu0 0.0
    %113 = vmatpush1.msra.mxu0 0.0
    %114 = vmatprep.subr.mxu0 0.0
    %115 = vmatpush1.msra.mxu0 0.0
    %116 = vmatprep.subr.mxu0 0.0
    %117 = vmatpush1.msra.mxu0 0.0
    %118 = vmatprep.subr.mxu0 0.0
    %119 = vmatpush1.msra.mxu0 0.0
    %120 = vmatprep.subr.mxu0 0.0
    %121 = vmatpush1.msra.mxu0 0.0
    %122 = vmatprep.subr.mxu0 0.0
    %123 = vmatpush1.msra.mxu0 0.0
    %124 = vmatprep.subr.mxu0 0.0
    %125 = vmatpush1.msra.mxu0 0.0
    %126 = vmatprep.subr.mxu0 0.0
    %127 = vmatpush1.msra.mxu0 0.0
    %128 = vmatprep.subr.mxu0 0.0
    %129 = vmatpush1.msra.mxu0 0.0
    %130 = vmatprep.subr.mxu0 0.0
    %131 = vmatpush1.msra.mxu0 0.0
    %132 = vmatprep.subr.mxu0 0.0
    %133 = vmatpush1.msra.mxu0 0.0
    %134 = vmatprep.subr.mxu0 0.0
    %135 = vmatpush1.msra.mxu0 0.0
    %136 = vmatprep.subr.mxu0 0.0
    %137 = vmatpush1.msra.mxu0 0.0
    %138 = vmatprep.subr.mxu0 0.0
    %139 = vmatpush1.msra.mxu0 0.0
    %140 = vmatprep.subr.mxu0 0.0
    %141 = vmatpush1.msra.mxu0 0.0
    %142 = vmatprep.subr.mxu0 0.0
    %143 = vmatpush1.msra.mxu0 0.0
    %144 = vmatprep.subr.mxu0 0.0
    %145 = vmatpush1.msra.mxu0 0.0
    %146 = vmatprep.subr.mxu0 0.0
    %147 = vmatpush1.msra.mxu0 0.0
    %148 = vmatprep.subr.mxu0 0.0
    %149 = vmatpush1.msra.mxu0 0.0
    %150 = vmatprep.subr.mxu0 0.0
    %151 = vmatpush1.msra.mxu0 0.0
    %152 = vmatprep.subr.mxu0 0.0
    %153 = vmatpush1.msra.mxu0 0.0
    %154 = vmatprep.subr.mxu0 0.0
    %155 = vmatpush1.msra.mxu0 0.0
    %156 = vmatprep.mubr.f32.mxu0 0.0
    %v157 = vand.u32 %v89, 4294901760
    %v158 = vsub.f32 %v89, %v157
    %v159 = vand.u32 %v158, 4294901760
    %v160 = vsub.f32 %v158, %v159
    %v161 = vand.u32 %v160, 4294901760
    %162 = vmatmul.mubr.f32.gmra.mrb[0].mxu0 %v161
    %v163 = vpop.f32.mrb[0].mxu0
    %v164 = vadd.f32 %v85, %v163
    %v165 = vpop.f32.mrb[0].mxu0
    %166 = vdwg.mxu0
    %167 = vmatprep.subr.mxu0 0.0
    %v168 = vand.u32 %v79, 4294901760
    %v169 = vsub.f32 %v79, %v168
    %v170 = vand.u32 %v169, 4294901760
    %v171 = vsub.f32 %v169, %v170
    %v172 = vand.u32 %v171, 4294901760
    %173 = vmatpush1.msra.mxu0 %v172
    %174 = vmatprep.subr.mxu0 0.0
    %175 = vmatpush1.msra.mxu0 0.0
    %176 = vmatprep.subr.mxu0 0.0
    %177 = vmatpush1.msra.mxu0 0.0
    %178 = vmatprep.subr.mxu0 0.0
    %179 = vmatpush1.msra.mxu0 0.0
    %180 = vmatprep.subr.mxu0 0.0
    %181 = vmatpush1.msra.mxu0 0.0
    %182 = vmatprep.subr.mxu0 0.0
    %183 = vmatpush1.msra.mxu0 0.0
    %184 = vmatprep.subr.mxu0 0.0
    %185 = vmatpush1.msra.mxu0 0.0
    %186 = vmatprep.subr.mxu0 0.0
    %187 = vmatpush1.msra.mxu0 0.0
    %188 = vmatprep.subr.mxu0 0.0
    %189 = vmatpush1.msra.mxu0 0.0
    %190 = vmatprep.subr.mxu0 0.0
    %191 = vmatpush1.msra.mxu0 0.0
    %192 = vmatprep.subr.mxu0 0.0
    %193 = vmatpush1.msra.mxu0 0.0
    %194 = vmatprep.subr.mxu0 0.0
    %195 = vmatpush1.msra.mxu0 0.0
    %196 = vmatprep.subr.mxu0 0.0
    %197 = vmatpush1.msra.mxu0 0.0
    %198 = vmatprep.subr.mxu0 0.0
    %199 = vmatpush1.msra.mxu0 0.0
    %200 = vmatprep.subr.mxu0 0.0
    %201 = vmatpush1.msra.mxu0 0.0
    %202 = vmatprep.subr.mxu0 0.0
    %203 = vmatpush1.msra.mxu0 0.0
    %204 = vmatprep.subr.mxu0 0.0
    %205 = vmatpush1.msra.mxu0 0.0
    %206 = vmatprep.subr.mxu0 0.0
    %207 = vmatpush1.msra.mxu0 0.0
    %208 = vmatprep.subr.mxu0 0.0
    %209 = vmatpush1.msra.mxu0 0.0
    %210 = vmatprep.subr.mxu0 0.0
    %211 = vmatpush1.msra.mxu0 0.0
    %212 = vmatprep.subr.mxu0 0.0
    %213 = vmatpush1.msra.mxu0 0.0
    %214 = vmatprep.subr.mxu0 0.0
    %215 = vmatpush1.msra.mxu0 0.0
    %216 = vmatprep.subr.mxu0 0.0
    %217 = vmatpush1.msra.mxu0 0.0
    %218 = vmatprep.subr.mxu0 0.0
    %219 = vmatpush1.msra.mxu0 0.0
    %220 = vmatprep.subr.mxu0 0.0
    %221 = vmatpush1.msra.mxu0 0.0
    %222 = vmatprep.subr.mxu0 0.0
    %223 = vmatpush1.msra.mxu0 0.0
    %224 = vmatprep.subr.mxu0 0.0
    %225 = vmatpush1.msra.mxu0 0.0
    %226 = vmatprep.subr.mxu0 0.0
    %227 = vmatpush1.msra.mxu0 0.0
    %228 = vmatprep.subr.mxu0 0.0
    %229 = vmatpush1.msra.mxu0 0.0
    %230 = vmatprep.subr.mxu0 0.0
    %231 = vmatpush1.msra.mxu0 0.0
    %232 = vmatprep.subr.mxu0 0.0
    %233 = vmatpush1.msra.mxu0 0.0
    %234 = vmatprep.subr.mxu0 0.0
    %235 = vmatpush1.msra.mxu0 0.0
    %236 = vmatprep.mubr.f32.mxu0 0.0
    %v237 = vand.u32 %v89, 4294901760
    %238 = vmatmul.mubr.f32.gmra.mrb[0].mxu0 %v237
    %v239 = vpop.f32.mrb[0].mxu0
    %v240 = vadd.f32 %v164, %v239
    %v241 = vpop.f32.mrb[0].mxu0
    %242 = vdwg.mxu0
    %243 = vmatprep.subr.mxu0 0.0
    %v244 = vand.u32 %v79, 4294901760
    %v245 = vsub.f32 %v79, %v244
    %246 = vmatpush1.msra.mxu0 %v245
    %247 = vmatprep.subr.mxu0 0.0
    %248 = vmatpush1.msra.mxu0 0.0
    %249 = vmatprep.subr.mxu0 0.0
    %250 = vmatpush1.msra.mxu0 0.0
    %251 = vmatprep.subr.mxu0 0.0
    %252 = vmatpush1.msra.mxu0 0.0
    %253 = vmatprep.subr.mxu0 0.0
    %254 = vmatpush1.msra.mxu0 0.0
    %255 = vmatprep.subr.mxu0 0.0
    %256 = vmatpush1.msra.mxu0 0.0
    %257 = vmatprep.subr.mxu0 0.0
    %258 = vmatpush1.msra.mxu0 0.0
    %259 = vmatprep.subr.mxu0 0.0
    %260 = vmatpush1.msra.mxu0 0.0
    %261 = vmatprep.subr.mxu0 0.0
    %262 = vmatpush1.msra.mxu0 0.0
    %263 = vmatprep.subr.mxu0 0.0
    %264 = vmatpush1.msra.mxu0 0.0
    %265 = vmatprep.subr.mxu0 0.0
    %266 = vmatpush1.msra.mxu0 0.0
    %267 = vmatprep.subr.mxu0 0.0
    %268 = vmatpush1.msra.mxu0 0.0
    %269 = vmatprep.subr.mxu0 0.0
    %270 = vmatpush1.msra.mxu0 0.0
    %271 = vmatprep.subr.mxu0 0.0
    %272 = vmatpush1.msra.mxu0 0.0
    %273 = vmatprep.subr.mxu0 0.0
    %274 = vmatpush1.msra.mxu0 0.0
    %275 = vmatprep.subr.mxu0 0.0
    %276 = vmatpush1.msra.mxu0 0.0
    %277 = vmatprep.subr.mxu0 0.0
    %278 = vmatpush1.msra.mxu0 0.0
    %279 = vmatprep.subr.mxu0 0.0
    %280 = vmatpush1.msra.mxu0 0.0
    %281 = vmatprep.subr.mxu0 0.0
    %282 = vmatpush1.msra.mxu0 0.0
    %283 = vmatprep.subr.mxu0 0.0
    %284 = vmatpush1.msra.mxu0 0.0
    %285 = vmatprep.subr.mxu0 0.0
    %286 = vmatpush1.msra.mxu0 0.0
    %287 = vmatprep.subr.mxu0 0.0
    %288 = vmatpush1.msra.mxu0 0.0
    %289 = vmatprep.subr.mxu0 0.0
    %290 = vmatpush1.msra.mxu0 0.0
    %291 = vmatprep.subr.mxu0 0.0
    %292 = vmatpush1.msra.mxu0 0.0
    %293 = vmatprep.subr.mxu0 0.0
    %294 = vmatpush1.msra.mxu0 0.0
    %295 = vmatprep.subr.mxu0 0.0
    %296 = vmatpush1.msra.mxu0 0.0
    %297 = vmatprep.subr.mxu0 0.0
    %298 = vmatpush1.msra.mxu0 0.0
    %299 = vmatprep.subr.mxu0 0.0
    %300 = vmatpush1.msra.mxu0 0.0
    %301 = vmatprep.subr.mxu0 0.0
    %302 = vmatpush1.msra.mxu0 0.0
    %303 = vmatprep.subr.mxu0 0.0
    %304 = vmatpush1.msra.mxu0 0.0
    %305 = vmatprep.subr.mxu0 0.0
    %306 = vmatpush1.msra.mxu0 0.0
    %307 = vmatprep.subr.mxu0 0.0
    %308 = vmatpush1.msra.mxu0 0.0
    %309 = vmatprep.mubr.f32.mxu0 0.0
    %v310 = vand.u32 %v89, 4294901760
    %v311 = vsub.f32 %v89, %v310
    %312 = vmatmul.mubr.f32.gmra.mrb[0].mxu0 %v311
    %v313 = vpop.f32.mrb[0].mxu0
    %v314 = vadd.f32 %v240, %v313
    %v315 = vpop.f32.mrb[0].mxu0
    %316 = vdwg.mxu0
    %317 = vmatprep.subr.mxu0 0.0
    %v318 = vand.u32 %v79, 4294901760
    %319 = vmatpush1.msra.mxu0 %v318
    %320 = vmatprep.subr.mxu0 0.0
    %321 = vmatpush1.msra.mxu0 0.0
    %322 = vmatprep.subr.mxu0 0.0
    %323 = vmatpush1.msra.mxu0 0.0
    %324 = vmatprep.subr.mxu0 0.0
    %325 = vmatpush1.msra.mxu0 0.0
    %326 = vmatprep.subr.mxu0 0.0
    %327 = vmatpush1.msra.mxu0 0.0
    %328 = vmatprep.subr.mxu0 0.0
    %329 = vmatpush1.msra.mxu0 0.0
    %330 = vmatprep.subr.mxu0 0.0
    %331 = vmatpush1.msra.mxu0 0.0
    %332 = vmatprep.subr.mxu0 0.0
    %333 = vmatpush1.msra.mxu0 0.0
    %334 = vmatprep.subr.mxu0 0.0
    %335 = vmatpush1.msra.mxu0 0.0
    %336 = vmatprep.subr.mxu0 0.0
    %337 = vmatpush1.msra.mxu0 0.0
    %338 = vmatprep.subr.mxu0 0.0
    %339 = vmatpush1.msra.mxu0 0.0
    %340 = vmatprep.subr.mxu0 0.0
    %341 = vmatpush1.msra.mxu0 0.0
    %342 = vmatprep.subr.mxu0 0.0
    %343 = vmatpush1.msra.mxu0 0.0
    %344 = vmatprep.subr.mxu0 0.0
    %345 = vmatpush1.msra.mxu0 0.0
    %346 = vmatprep.subr.mxu0 0.0
    %347 = vmatpush1.msra.mxu0 0.0
    %348 = vmatprep.subr.mxu0 0.0
    %349 = vmatpush1.msra.mxu0 0.0
    %350 = vmatprep.subr.mxu0 0.0
    %351 = vmatpush1.msra.mxu0 0.0
    %352 = vmatprep.subr.mxu0 0.0
    %353 = vmatpush1.msra.mxu0 0.0
    %354 = vmatprep.subr.mxu0 0.0
    %355 = vmatpush1.msra.mxu0 0.0
    %356 = vmatprep.subr.mxu0 0.0
    %357 = vmatpush1.msra.mxu0 0.0
    %358 = vmatprep.subr.mxu0 0.0
    %359 = vmatpush1.msra.mxu0 0.0
    %360 = vmatprep.subr.mxu0 0.0
    %361 = vmatpush1.msra.mxu0 0.0
    %362 = vmatprep.subr.mxu0 0.0
    %363 = vmatpush1.msra.mxu0 0.0
    %364 = vmatprep.subr.mxu0 0.0
    %365 = vmatpush1.msra.mxu0 0.0
    %366 = vmatprep.subr.mxu0 0.0
    %367 = vmatpush1.msra.mxu0 0.0
    %368 = vmatprep.subr.mxu0 0.0
    %369 = vmatpush1.msra.mxu0 0.0
    %370 = vmatprep.subr.mxu0 0.0
    %371 = vmatpush1.msra.mxu0 0.0
    %372 = vmatprep.subr.mxu0 0.0
    %373 = vmatpush1.msra.mxu0 0.0
    %374 = vmatprep.subr.mxu0 0.0
    %375 = vmatpush1.msra.mxu0 0.0
    %376 = vmatprep.subr.mxu0 0.0
    %377 = vmatpush1.msra.mxu0 0.0
    %378 = vmatprep.subr.mxu0 0.0
    %379 = vmatpush1.msra.mxu0 0.0
    %380 = vmatprep.subr.mxu0 0.0
    %381 = vmatpush1.msra.mxu0 0.0
    %382 = vmatprep.mubr.f32.mxu0 0.0
    %v383 = vand.u32 %v89, 4294901760
    %v384 = vsub.f32 %v89, %v383
    %v385 = vand.u32 %v384, 4294901760
    %386 = vmatmul.mubr.f32.gmra.mrb[0].mxu0 %v385
    %v387 = vpop.f32.mrb[0].mxu0
    %v388 = vadd.f32 %v314, %v387
    %v389 = vpop.f32.mrb[0].mxu0
    %390 = vdwg.mxu0
    %391 = vmatprep.subr.mxu0 0.0
    %v392 = vand.u32 %v79, 4294901760
    %v393 = vsub.f32 %v79, %v392
    %v394 = vand.u32 %v393, 4294901760
    %395 = vmatpush1.msra.mxu0 %v394
    %396 = vmatprep.subr.mxu0 0.0
    %397 = vmatpush1.msra.mxu0 0.0
    %398 = vmatprep.subr.mxu0 0.0
    %399 = vmatpush1.msra.mxu0 0.0
    %400 = vmatprep.subr.mxu0 0.0
    %401 = vmatpush1.msra.mxu0 0.0
    %402 = vmatprep.subr.mxu0 0.0
    %403 = vmatpush1.msra.mxu0 0.0
    %404 = vmatprep.subr.mxu0 0.0
    %405 = vmatpush1.msra.mxu0 0.0
    %406 = vmatprep.subr.mxu0 0.0
    %407 = vmatpush1.msra.mxu0 0.0
    %408 = vmatprep.subr.mxu0 0.0
    %409 = vmatpush1.msra.mxu0 0.0
    %410 = vmatprep.subr.mxu0 0.0
    %411 = vmatpush1.msra.mxu0 0.0
    %412 = vmatprep.subr.mxu0 0.0
    %413 = vmatpush1.msra.mxu0 0.0
    %414 = vmatprep.subr.mxu0 0.0
    %415 = vmatpush1.msra.mxu0 0.0
    %416 = vmatprep.subr.mxu0 0.0
    %417 = vmatpush1.msra.mxu0 0.0
    %418 = vmatprep.subr.mxu0 0.0
    %419 = vmatpush1.msra.mxu0 0.0
    %420 = vmatprep.subr.mxu0 0.0
    %421 = vmatpush1.msra.mxu0 0.0
    %422 = vmatprep.subr.mxu0 0.0
    %423 = vmatpush1.msra.mxu0 0.0
    %424 = vmatprep.subr.mxu0 0.0
    %425 = vmatpush1.msra.mxu0 0.0
    %426 = vmatprep.subr.mxu0 0.0
    %427 = vmatpush1.msra.mxu0 0.0
    %428 = vmatprep.subr.mxu0 0.0
    %429 = vmatpush1.msra.mxu0 0.0
    %430 = vmatprep.subr.mxu0 0.0
    %431 = vmatpush1.msra.mxu0 0.0
    %432 = vmatprep.subr.mxu0 0.0
    %433 = vmatpush1.msra.mxu0 0.0
    %434 = vmatprep.subr.mxu0 0.0
    %435 = vmatpush1.msra.mxu0 0.0
    %436 = vmatprep.subr.mxu0 0.0
    %437 = vmatpush1.msra.mxu0 0.0
    %438 = vmatprep.subr.mxu0 0.0
    %439 = vmatpush1.msra.mxu0 0.0
    %440 = vmatprep.subr.mxu0 0.0
    %441 = vmatpush1.msra.mxu0 0.0
    %442 = vmatprep.subr.mxu0 0.0
    %443 = vmatpush1.msra.mxu0 0.0
    %444 = vmatprep.subr.mxu0 0.0
    %445 = vmatpush1.msra.mxu0 0.0
    %446 = vmatprep.subr.mxu0 0.0
    %447 = vmatpush1.msra.mxu0 0.0
    %448 = vmatprep.subr.mxu0 0.0
    %449 = vmatpush1.msra.mxu0 0.0
    %450 = vmatprep.subr.mxu0 0.0
    %451 = vmatpush1.msra.mxu0 0.0
    %452 = vmatprep.subr.mxu0 0.0
    %453 = vmatpush1.msra.mxu0 0.0
    %454 = vmatprep.subr.mxu0 0.0
    %455 = vmatpush1.msra.mxu0 0.0
    %456 = vmatprep.subr.mxu0 0.0
    %457 = vmatpush1.msra.mxu0 0.0
    %458 = vmatprep.mubr.f32.mxu0 0.0
    %v459 = vand.u32 %v89, 4294901760
    %460 = vmatmul.mubr.f32.gmra.mrb[0].mxu0 %v459
    %v461 = vpop.f32.mrb[0].mxu0
    %v462 = vadd.f32 %v388, %v461
    %v463 = vpop.f32.mrb[0].mxu0
    %464 = vdwg.mxu0
    %465 = vmatprep.subr.mxu0 0.0
    %v466 = vand.u32 %v79, 4294901760
    %467 = vmatpush1.msra.mxu0 %v466
    %468 = vmatprep.subr.mxu0 0.0
    %469 = vmatpush1.msra.mxu0 0.0
    %470 = vmatprep.subr.mxu0 0.0
    %471 = vmatpush1.msra.mxu0 0.0
    %472 = vmatprep.subr.mxu0 0.0
    %473 = vmatpush1.msra.mxu0 0.0
    %474 = vmatprep.subr.mxu0 0.0
    %475 = vmatpush1.msra.mxu0 0.0
    %476 = vmatprep.subr.mxu0 0.0
    %477 = vmatpush1.msra.mxu0 0.0
    %478 = vmatprep.subr.mxu0 0.0
    %479 = vmatpush1.msra.mxu0 0.0
    %480 = vmatprep.subr.mxu0 0.0
    %481 = vmatpush1.msra.mxu0 0.0
    %482 = vmatprep.subr.mxu0 0.0
    %483 = vmatpush1.msra.mxu0 0.0
    %484 = vmatprep.subr.mxu0 0.0
    %485 = vmatpush1.msra.mxu0 0.0
    %486 = vmatprep.subr.mxu0 0.0
    %487 = vmatpush1.msra.mxu0 0.0
    %488 = vmatprep.subr.mxu0 0.0
    %489 = vmatpush1.msra.mxu0 0.0
    %490 = vmatprep.subr.mxu0 0.0
    %491 = vmatpush1.msra.mxu0 0.0
    %492 = vmatprep.subr.mxu0 0.0
    %493 = vmatpush1.msra.mxu0 0.0
    %494 = vmatprep.subr.mxu0 0.0
    %495 = vmatpush1.msra.mxu0 0.0
    %496 = vmatprep.subr.mxu0 0.0
    %497 = vmatpush1.msra.mxu0 0.0
    %498 = vmatprep.subr.mxu0 0.0
    %499 = vmatpush1.msra.mxu0 0.0
    %500 = vmatprep.subr.mxu0 0.0
    %501 = vmatpush1.msra.mxu0 0.0
    %502 = vmatprep.subr.mxu0 0.0
    %503 = vmatpush1.msra.mxu0 0.0
    %504 = vmatprep.subr.mxu0 0.0
    %505 = vmatpush1.msra.mxu0 0.0
    %506 = vmatprep.subr.mxu0 0.0
    %507 = vmatpush1.msra.mxu0 0.0
    %508 = vmatprep.subr.mxu0 0.0
    %509 = vmatpush1.msra.mxu0 0.0
    %510 = vmatprep.subr.mxu0 0.0
    %511 = vmatpush1.msra.mxu0 0.0
    %512 = vmatprep.subr.mxu0 0.0
    %513 = vmatpush1.msra.mxu0 0.0
    %514 = vmatprep.subr.mxu0 0.0
    %515 = vmatpush1.msra.mxu0 0.0
    %516 = vmatprep.subr.mxu0 0.0
    %517 = vmatpush1.msra.mxu0 0.0
    %518 = vmatprep.subr.mxu0 0.0
    %519 = vmatpush1.msra.mxu0 0.0
    %520 = vmatprep.subr.mxu0 0.0
    %521 = vmatpush1.msra.mxu0 0.0
    %522 = vmatprep.subr.mxu0 0.0
    %523 = vmatpush1.msra.mxu0 0.0
    %524 = vmatprep.subr.mxu0 0.0
    %525 = vmatpush1.msra.mxu0 0.0
    %526 = vmatprep.subr.mxu0 0.0
    %527 = vmatpush1.msra.mxu0 0.0
    %528 = vmatprep.subr.mxu0 0.0
    %529 = vmatpush1.msra.mxu0 0.0
    %530 = vmatprep.mubr.f32.mxu0 0.0
    %v531 = vand.u32 %v89, 4294901760
    %532 = vmatmul.mubr.f32.gmra.mrb[0].mxu0 %v531
    %v533 = vpop.f32.mrb[0].mxu0
    %v534 = vadd.f32 %v462, %v533
    %v535 = vpop.f32.mrb[0].mxu0
    %536 = vdwg.mxu0
    %v537 = vmax.f32 %v534, 0.0
    %v538 = vld [vmem:[#allocation7] sm:$0xff]
    %v539 = vld [vmem:[#allocation7 + $0x8] sm:$0xff]
    %v540 = vld [vmem:[#allocation7 + $0x10] sm:$0xff]
    %v541 = vld [vmem:[#allocation7 + $0x18] sm:$0xff]
    %v542 = vld [vmem:[%s4] sm:$0x1]
    %v544 = vlaneseq
    %v545 = vshrl.u32 %v544, 7
    %v546 = vsub.s32 0, %v545
    %v547 = vrot.slane %v542, %v546
    %vm549 = vcmask 261120
    %v551 = vsel %vm549, %v537, 0
    %553 = vmatprep.subr.mxu0 0.0
    %v554 = vand.u32 %v538, 4294901760
    %555 = vmatpush1.msra.mxu0 %v554
    %556 = vmatprep.subr.mxu0 0.0
    %v557 = vand.u32 %v539, 4294901760
    %558 = vmatpush1.msra.mxu0 %v557
    %559 = vmatprep.subr.mxu0 0.0
    %v560 = vand.u32 %v540, 4294901760
    %561 = vmatpush1.msra.mxu0 %v560
    %562 = vmatprep.subr.mxu0 0.0
    %v563 = vand.u32 %v541, 4294901760
    %564 = vmatpush1.msra.mxu0 %v563
    %565 = vmatprep.subr.mxu0 0.0
    %566 = vmatpush1.msra.mxu0 0.0
    %567 = vmatprep.subr.mxu0 0.0
    %568 = vmatpush1.msra.mxu0 0.0
    %569 = vmatprep.subr.mxu0 0.0
    %570 = vmatpush1.msra.mxu0 0.0
    %571 = vmatprep.subr.mxu0 0.0
    %572 = vmatpush1.msra.mxu0 0.0
    %573 = vmatprep.subr.mxu0 0.0
    %574 = vmatpush1.msra.mxu0 0.0
    %575 = vmatprep.subr.mxu0 0.0
    %576 = vmatpush1.msra.mxu0 0.0
    %577 = vmatprep.subr.mxu0 0.0
    %578 = vmatpush1.msra.mxu0 0.0
    %579 = vmatprep.subr.mxu0 0.0
    %580 = vmatpush1.msra.mxu0 0.0
    %581 = vmatprep.subr.mxu0 0.0
    %582 = vmatpush1.msra.mxu0 0.0
    %583 = vmatprep.subr.mxu0 0.0
    %584 = vmatpush1.msra.mxu0 0.0
    %585 = vmatprep.subr.mxu0 0.0
    %586 = vmatpush1.msra.mxu0 0.0
    %587 = vmatprep.subr.mxu0 0.0
    %588 = vmatpush1.msra.mxu0 0.0
    %589 = vmatprep.subr.mxu0 0.0
    %590 = vmatpush1.msra.mxu0 0.0
    %591 = vmatprep.subr.mxu0 0.0
    %592 = vmatpush1.msra.mxu0 0.0
    %593 = vmatprep.subr.mxu0 0.0
    %594 = vmatpush1.msra.mxu0 0.0
    %595 = vmatprep.subr.mxu0 0.0
    %596 = vmatpush1.msra.mxu0 0.0
    %597 = vmatprep.subr.mxu0 0.0
    %598 = vmatpush1.msra.mxu0 0.0
    %599 = vmatprep.subr.mxu0 0.0
    %600 = vmatpush1.msra.mxu0 0.0
    %601 = vmatprep.subr.mxu0 0.0
    %602 = vmatpush1.msra.mxu0 0.0
    %603 = vmatprep.subr.mxu0 0.0
    %604 = vmatpush1.msra.mxu0 0.0
    %605 = vmatprep.subr.mxu0 0.0
    %606 = vmatpush1.msra.mxu0 0.0
    %607 = vmatprep.subr.mxu0 0.0
    %608 = vmatpush1.msra.mxu0 0.0
    %609 = vmatprep.subr.mxu0 0.0
    %610 = vmatpush1.msra.mxu0 0.0
    %611 = vmatprep.subr.mxu0 0.0
    %612 = vmatpush1.msra.mxu0 0.0
    %613 = vmatprep.subr.mxu0 0.0
    %614 = vmatpush1.msra.mxu0 0.0
    %615 = vmatprep.subr.mxu0 0.0
    %616 = vmatpush1.msra.mxu0 0.0
    %617 = vmatprep.subr.mxu0 0.0
    %618 = vmatpush1.msra.mxu0 0.0
    %619 = vmatprep.subr.mxu0 0.0
    %620 = vmatpush1.msra.mxu0 0.0
    %621 = vmatprep.mubr.f32.mxu0 0.0
    %v622 = vand.u32 %v551, 4294901760
    %v623 = vsub.f32 %v551, %v622
    %v624 = vand.u32 %v623, 4294901760
    %v625 = vsub.f32 %v623, %v624
    %v626 = vand.u32 %v625, 4294901760
    %627 = vmatmul.mubr.f32.gmra.mrb[0].mxu0 %v626
    %v628 = vpop.f32.mrb[0].mxu0
    %v629 = vadd.f32 %v547, %v628
    %v630 = vpop.f32.mrb[0].mxu0
    %631 = vdwg.mxu0
    %632 = vmatprep.subr.mxu0 0.0
    %v633 = vand.u32 %v538, 4294901760
    %v634 = vsub.f32 %v538, %v633
    %v635 = vand.u32 %v634, 4294901760
    %v636 = vsub.f32 %v634, %v635
    %v637 = vand.u32 %v636, 4294901760
    %638 = vmatpush1.msra.mxu0 %v637
    %639 = vmatprep.subr.mxu0 0.0
    %v640 = vand.u32 %v539, 4294901760
    %v641 = vsub.f32 %v539, %v640
    %v642 = vand.u32 %v641, 4294901760
    %v643 = vsub.f32 %v641, %v642
    %v644 = vand.u32 %v643, 4294901760
    %645 = vmatpush1.msra.mxu0 %v644
    %646 = vmatprep.subr.mxu0 0.0
    %v647 = vand.u32 %v540, 4294901760
    %v648 = vsub.f32 %v540, %v647
    %v649 = vand.u32 %v648, 4294901760
    %v650 = vsub.f32 %v648, %v649
    %v651 = vand.u32 %v650, 4294901760
    %652 = vmatpush1.msra.mxu0 %v651
    %653 = vmatprep.subr.mxu0 0.0
    %v654 = vand.u32 %v541, 4294901760
    %v655 = vsub.f32 %v541, %v654
    %v656 = vand.u32 %v655, 4294901760
    %v657 = vsub.f32 %v655, %v656
    %v658 = vand.u32 %v657, 4294901760
    %659 = vmatpush1.msra.mxu0 %v658
    %660 = vmatprep.subr.mxu0 0.0
    %661 = vmatpush1.msra.mxu0 0.0
    %662 = vmatprep.subr.mxu0 0.0
    %663 = vmatpush1.msra.mxu0 0.0
    %664 = vmatprep.subr.mxu0 0.0
    %665 = vmatpush1.msra.mxu0 0.0
    %666 = vmatprep.subr.mxu0 0.0
    %667 = vmatpush1.msra.mxu0 0.0
    %668 = vmatprep.subr.mxu0 0.0
    %669 = vmatpush1.msra.mxu0 0.0
    %670 = vmatprep.subr.mxu0 0.0
    %671 = vmatpush1.msra.mxu0 0.0
    %672 = vmatprep.subr.mxu0 0.0
    %673 = vmatpush1.msra.mxu0 0.0
    %674 = vmatprep.subr.mxu0 0.0
    %675 = vmatpush1.msra.mxu0 0.0
    %676 = vmatprep.subr.mxu0 0.0
    %677 = vmatpush1.msra.mxu0 0.0
    %678 = vmatprep.subr.mxu0 0.0
    %679 = vmatpush1.msra.mxu0 0.0
    %680 = vmatprep.subr.mxu0 0.0
    %681 = vmatpush1.msra.mxu0 0.0
    %682 = vmatprep.subr.mxu0 0.0
    %683 = vmatpush1.msra.mxu0 0.0
    %684 = vmatprep.subr.mxu0 0.0
    %685 = vmatpush1.msra.mxu0 0.0
    %686 = vmatprep.subr.mxu0 0.0
    %687 = vmatpush1.msra.mxu0 0.0
    %688 = vmatprep.subr.mxu0 0.0
    %689 = vmatpush1.msra.mxu0 0.0
    %690 = vmatprep.subr.mxu0 0.0
    %691 = vmatpush1.msra.mxu0 0.0
    %692 = vmatprep.subr.mxu0 0.0
    %693 = vmatpush1.msra.mxu0 0.0
    %694 = vmatprep.subr.mxu0 0.0
    %695 = vmatpush1.msra.mxu0 0.0
    %696 = vmatprep.subr.mxu0 0.0
    %697 = vmatpush1.msra.mxu0 0.0
    %698 = vmatprep.subr.mxu0 0.0
    %699 = vmatpush1.msra.mxu0 0.0
    %700 = vmatprep.subr.mxu0 0.0
    %701 = vmatpush1.msra.mxu0 0.0
    %702 = vmatprep.subr.mxu0 0.0
    %703 = vmatpush1.msra.mxu0 0.0
    %704 = vmatprep.subr.mxu0 0.0
    %705 = vmatpush1.msra.mxu0 0.0
    %706 = vmatprep.subr.mxu0 0.0
    %707 = vmatpush1.msra.mxu0 0.0
    %708 = vmatprep.subr.mxu0 0.0
    %709 = vmatpush1.msra.mxu0 0.0
    %710 = vmatprep.subr.mxu0 0.0
    %711 = vmatpush1.msra.mxu0 0.0
    %712 = vmatprep.subr.mxu0 0.0
    %713 = vmatpush1.msra.mxu0 0.0
    %714 = vmatprep.subr.mxu0 0.0
    %715 = vmatpush1.msra.mxu0 0.0
    %716 = vmatprep.mubr.f32.mxu0 0.0
    %v717 = vand.u32 %v551, 4294901760
    %718 = vmatmul.mubr.f32.gmra.mrb[0].mxu0 %v717
    %v719 = vpop.f32.mrb[0].mxu0
    %v720 = vadd.f32 %v629, %v719
    %v721 = vpop.f32.mrb[0].mxu0
    %722 = vdwg.mxu0
    %723 = vmatprep.subr.mxu0 0.0
    %v724 = vand.u32 %v538, 4294901760
    %v725 = vsub.f32 %v538, %v724
    %726 = vmatpush1.msra.mxu0 %v725
    %727 = vmatprep.subr.mxu0 0.0
    %v728 = vand.u32 %v539, 4294901760
    %v729 = vsub.f32 %v539, %v728
    %730 = vmatpush1.msra.mxu0 %v729
    %731 = vmatprep.subr.mxu0 0.0
    %v732 = vand.u32 %v540, 4294901760
    %v733 = vsub.f32 %v540, %v732
    %734 = vmatpush1.msra.mxu0 %v733
    %735 = vmatprep.subr.mxu0 0.0
    %v736 = vand.u32 %v541, 4294901760
    %v737 = vsub.f32 %v541, %v736
    %738 = vmatpush1.msra.mxu0 %v737
    %739 = vmatprep.subr.mxu0 0.0
    %740 = vmatpush1.msra.mxu0 0.0
    %741 = vmatprep.subr.mxu0 0.0
    %742 = vmatpush1.msra.mxu0 0.0
    %743 = vmatprep.subr.mxu0 0.0
    %744 = vmatpush1.msra.mxu0 0.0
    %745 = vmatprep.subr.mxu0 0.0
    %746 = vmatpush1.msra.mxu0 0.0
    %747 = vmatprep.subr.mxu0 0.0
    %748 = vmatpush1.msra.mxu0 0.0
    %749 = vmatprep.subr.mxu0 0.0
    %750 = vmatpush1.msra.mxu0 0.0
    %751 = vmatprep.subr.mxu0 0.0
    %752 = vmatpush1.msra.mxu0 0.0
    %753 = vmatprep.subr.mxu0 0.0
    %754 = vmatpush1.msra.mxu0 0.0
    %755 = vmatprep.subr.mxu0 0.0
    %756 = vmatpush1.msra.mxu0 0.0
    %757 = vmatprep.subr.mxu0 0.0
    %758 = vmatpush1.msra.mxu0 0.0
    %759 = vmatprep.subr.mxu0 0.0
    %760 = vmatpush1.msra.mxu0 0.0
    %761 = vmatprep.subr.mxu0 0.0
    %762 = vmatpush1.msra.mxu0 0.0
    %763 = vmatprep.subr.mxu0 0.0
    %764 = vmatpush1.msra.mxu0 0.0
    %765 = vmatprep.subr.mxu0 0.0
    %766 = vmatpush1.msra.mxu0 0.0
    %767 = vmatprep.subr.mxu0 0.0
    %768 = vmatpush1.msra.mxu0 0.0
    %769 = vmatprep.subr.mxu0 0.0
    %770 = vmatpush1.msra.mxu0 0.0
    %771 = vmatprep.subr.mxu0 0.0
    %772 = vmatpush1.msra.mxu0 0.0
    %773 = vmatprep.subr.mxu0 0.0
    %774 = vmatpush1.msra.mxu0 0.0
    %775 = vmatprep.subr.mxu0 0.0
    %776 = vmatpush1.msra.mxu0 0.0
    %777 = vmatprep.subr.mxu0 0.0
    %778 = vmatpush1.msra.mxu0 0.0
    %779 = vmatprep.subr.mxu0 0.0
    %780 = vmatpush1.msra.mxu0 0.0
    %781 = vmatprep.subr.mxu0 0.0
    %782 = vmatpush1.msra.mxu0 0.0
    %783 = vmatprep.subr.mxu0 0.0
    %784 = vmatpush1.msra.mxu0 0.0
    %785 = vmatprep.subr.mxu0 0.0
    %786 = vmatpush1.msra.mxu0 0.0
    %787 = vmatprep.subr.mxu0 0.0
    %788 = vmatpush1.msra.mxu0 0.0
    %789 = vmatprep.subr.mxu0 0.0
    %790 = vmatpush1.msra.mxu0 0.0
    %791 = vmatprep.subr.mxu0 0.0
    %792 = vmatpush1.msra.mxu0 0.0
    %793 = vmatprep.subr.mxu0 0.0
    %794 = vmatpush1.msra.mxu0 0.0
    %795 = vmatprep.mubr.f32.mxu0 0.0
    %v796 = vand.u32 %v551, 4294901760
    %v797 = vsub.f32 %v551, %v796
    %798 = vmatmul.mubr.f32.gmra.mrb[0].mxu0 %v797
    %v799 = vpop.f32.mrb[0].mxu0
    %v800 = vadd.f32 %v720, %v799
    %v801 = vpop.f32.mrb[0].mxu0
    %802 = vdwg.mxu0
    %803 = vmatprep.subr.mxu0 0.0
    %v804 = vand.u32 %v538, 4294901760
    %805 = vmatpush1.msra.mxu0 %v804
    %806 = vmatprep.subr.mxu0 0.0
    %v807 = vand.u32 %v539, 4294901760
    %808 = vmatpush1.msra.mxu0 %v807
    %809 = vmatprep.subr.mxu0 0.0
    %v810 = vand.u32 %v540, 4294901760
    %811 = vmatpush1.msra.mxu0 %v810
    %812 = vmatprep.subr.mxu0 0.0
    %v813 = vand.u32 %v541, 4294901760
    %814 = vmatpush1.msra.mxu0 %v813
    %815 = vmatprep.subr.mxu0 0.0
    %816 = vmatpush1.msra.mxu0 0.0
    %817 = vmatprep.subr.mxu0 0.0
    %818 = vmatpush1.msra.mxu0 0.0
    %819 = vmatprep.subr.mxu0 0.0
    %820 = vmatpush1.msra.mxu0 0.0
    %821 = vmatprep.subr.mxu0 0.0
    %822 = vmatpush1.msra.mxu0 0.0
    %823 = vmatprep.subr.mxu0 0.0
    %824 = vmatpush1.msra.mxu0 0.0
    %825 = vmatprep.subr.mxu0 0.0
    %826 = vmatpush1.msra.mxu0 0.0
    %827 = vmatprep.subr.mxu0 0.0
    %828 = vmatpush1.msra.mxu0 0.0
    %829 = vmatprep.subr.mxu0 0.0
    %830 = vmatpush1.msra.mxu0 0.0
    %831 = vmatprep.subr.mxu0 0.0
    %832 = vmatpush1.msra.mxu0 0.0
    %833 = vmatprep.subr.mxu0 0.0
    %834 = vmatpush1.msra.mxu0 0.0
    %835 = vmatprep.subr.mxu0 0.0
    %836 = vmatpush1.msra.mxu0 0.0
    %837 = vmatprep.subr.mxu0 0.0
    %838 = vmatpush1.msra.mxu0 0.0
    %839 = vmatprep.subr.mxu0 0.0
    %840 = vmatpush1.msra.mxu0 0.0
    %841 = vmatprep.subr.mxu0 0.0
    %842 = vmatpush1.msra.mxu0 0.0
    %843 = vmatprep.subr.mxu0 0.0
    %844 = vmatpush1.msra.mxu0 0.0
    %845 = vmatprep.subr.mxu0 0.0
    %846 = vmatpush1.msra.mxu0 0.0
    %847 = vmatprep.subr.mxu0 0.0
    %848 = vmatpush1.msra.mxu0 0.0
    %849 = vmatprep.subr.mxu0 0.0
    %850 = vmatpush1.msra.mxu0 0.0
    %851 = vmatprep.subr.mxu0 0.0
    %852 = vmatpush1.msra.mxu0 0.0
    %853 = vmatprep.subr.mxu0 0.0
    %854 = vmatpush1.msra.mxu0 0.0
    %855 = vmatprep.subr.mxu0 0.0
    %856 = vmatpush1.msra.mxu0 0.0
    %857 = vmatprep.subr.mxu0 0.0
    %858 = vmatpush1.msra.mxu0 0.0
    %859 = vmatprep.subr.mxu0 0.0
    %860 = vmatpush1.msra.mxu0 0.0
    %861 = vmatprep.subr.mxu0 0.0
    %862 = vmatpush1.msra.mxu0 0.0
    %863 = vmatprep.subr.mxu0 0.0
    %864 = vmatpush1.msra.mxu0 0.0
    %865 = vmatprep.subr.mxu0 0.0
    %866 = vmatpush1.msra.mxu0 0.0
    %867 = vmatprep.subr.mxu0 0.0
    %868 = vmatpush1.msra.mxu0 0.0
    %869 = vmatprep.subr.mxu0 0.0
    %870 = vmatpush1.msra.mxu0 0.0
    %871 = vmatprep.mubr.f32.mxu0 0.0
    %v872 = vand.u32 %v551, 4294901760
    %v873 = vsub.f32 %v551, %v872
    %v874 = vand.u32 %v873, 4294901760
    %875 = vmatmul.mubr.f32.gmra.mrb[0].mxu0 %v874
    %v876 = vpop.f32.mrb[0].mxu0
    %v877 = vadd.f32 %v800, %v876
    %v878 = vpop.f32.mrb[0].mxu0
    %879 = vdwg.mxu0
    %880 = vmatprep.subr.mxu0 0.0
    %v881 = vand.u32 %v538, 4294901760
    %v882 = vsub.f32 %v538, %v881
    %v883 = vand.u32 %v882, 4294901760
    %884 = vmatpush1.msra.mxu0 %v883
    %885 = vmatprep.subr.mxu0 0.0
    %v886 = vand.u32 %v539, 4294901760
    %v887 = vsub.f32 %v539, %v886
    %v888 = vand.u32 %v887, 4294901760
    %889 = vmatpush1.msra.mxu0 %v888
    %890 = vmatprep.subr.mxu0 0.0
    %v891 = vand.u32 %v540, 4294901760
    %v892 = vsub.f32 %v540, %v891
    %v893 = vand.u32 %v892, 4294901760
    %894 = vmatpush1.msra.mxu0 %v893
    %895 = vmatprep.subr.mxu0 0.0
    %v896 = vand.u32 %v541, 4294901760
    %v897 = vsub.f32 %v541, %v896
    %v898 = vand.u32 %v897, 4294901760
    %899 = vmatpush1.msra.mxu0 %v898
    %900 = vmatprep.subr.mxu0 0.0
    %901 = vmatpush1.msra.mxu0 0.0
    %902 = vmatprep.subr.mxu0 0.0
    %903 = vmatpush1.msra.mxu0 0.0
    %904 = vmatprep.subr.mxu0 0.0
    %905 = vmatpush1.msra.mxu0 0.0
    %906 = vmatprep.subr.mxu0 0.0
    %907 = vmatpush1.msra.mxu0 0.0
    %908 = vmatprep.subr.mxu0 0.0
    %909 = vmatpush1.msra.mxu0 0.0
    %910 = vmatprep.subr.mxu0 0.0
    %911 = vmatpush1.msra.mxu0 0.0
    %912 = vmatprep.subr.mxu0 0.0
    %913 = vmatpush1.msra.mxu0 0.0
    %914 = vmatprep.subr.mxu0 0.0
    %915 = vmatpush1.msra.mxu0 0.0
    %916 = vmatprep.subr.mxu0 0.0
    %917 = vmatpush1.msra.mxu0 0.0
    %918 = vmatprep.subr.mxu0 0.0
    %919 = vmatpush1.msra.mxu0 0.0
    %920 = vmatprep.subr.mxu0 0.0
    %921 = vmatpush1.msra.mxu0 0.0
    %922 = vmatprep.subr.mxu0 0.0
    %923 = vmatpush1.msra.mxu0 0.0
    %924 = vmatprep.subr.mxu0 0.0
    %925 = vmatpush1.msra.mxu0 0.0
    %926 = vmatprep.subr.mxu0 0.0
    %927 = vmatpush1.msra.mxu0 0.0
    %928 = vmatprep.subr.mxu0 0.0
    %929 = vmatpush1.msra.mxu0 0.0
    %930 = vmatprep.subr.mxu0 0.0
    %931 = vmatpush1.msra.mxu0 0.0
    %932 = vmatprep.subr.mxu0 0.0
    %933 = vmatpush1.msra.mxu0 0.0
    %934 = vmatprep.subr.mxu0 0.0
    %935 = vmatpush1.msra.mxu0 0.0
    %936 = vmatprep.subr.mxu0 0.0
    %937 = vmatpush1.msra.mxu0 0.0
    %938 = vmatprep.subr.mxu0 0.0
    %939 = vmatpush1.msra.mxu0 0.0
    %940 = vmatprep.subr.mxu0 0.0
    %941 = vmatpush1.msra.mxu0 0.0
    %942 = vmatprep.subr.mxu0 0.0
    %943 = vmatpush1.msra.mxu0 0.0
    %944 = vmatprep.subr.mxu0 0.0
    %945 = vmatpush1.msra.mxu0 0.0
    %946 = vmatprep.subr.mxu0 0.0
    %947 = vmatpush1.msra.mxu0 0.0
    %948 = vmatprep.subr.mxu0 0.0
    %949 = vmatpush1.msra.mxu0 0.0
    %950 = vmatprep.subr.mxu0 0.0
    %951 = vmatpush1.msra.mxu0 0.0
    %952 = vmatprep.subr.mxu0 0.0
    %953 = vmatpush1.msra.mxu0 0.0
    %954 = vmatprep.subr.mxu0 0.0
    %955 = vmatpush1.msra.mxu0 0.0
    %956 = vmatprep.mubr.f32.mxu0 0.0
    %v957 = vand.u32 %v551, 4294901760
    %958 = vmatmul.mubr.f32.gmra.mrb[0].mxu0 %v957
    %v959 = vpop.f32.mrb[0].mxu0
    %v960 = vadd.f32 %v877, %v959
    %v961 = vpop.f32.mrb[0].mxu0
    %962 = vdwg.mxu0
    %963 = vmatprep.subr.mxu0 0.0
    %v964 = vand.u32 %v538, 4294901760
    %965 = vmatpush1.msra.mxu0 %v964
    %966 = vmatprep.subr.mxu0 0.0
    %v967 = vand.u32 %v539, 4294901760
    %968 = vmatpush1.msra.mxu0 %v967
    %969 = vmatprep.subr.mxu0 0.0
    %v970 = vand.u32 %v540, 4294901760
    %971 = vmatpush1.msra.mxu0 %v970
    %972 = vmatprep.subr.mxu0 0.0
    %v973 = vand.u32 %v541, 4294901760
    %974 = vmatpush1.msra.mxu0 %v973
    %975 = vmatprep.subr.mxu0 0.0
    %976 = vmatpush1.msra.mxu0 0.0
    %977 = vmatprep.subr.mxu0 0.0
    %978 = vmatpush1.msra.mxu0 0.0
    %979 = vmatprep.subr.mxu0 0.0
    %980 = vmatpush1.msra.mxu0 0.0
    %981 = vmatprep.subr.mxu0 0.0
    %982 = vmatpush1.msra.mxu0 0.0
    %983 = vmatprep.subr.mxu0 0.0
    %984 = vmatpush1.msra.mxu0 0.0
    %985 = vmatprep.subr.mxu0 0.0
    %986 = vmatpush1.msra.mxu0 0.0
    %987 = vmatprep.subr.mxu0 0.0
    %988 = vmatpush1.msra.mxu0 0.0
    %989 = vmatprep.subr.mxu0 0.0
    %990 = vmatpush1.msra.mxu0 0.0
    %991 = vmatprep.subr.mxu0 0.0
    %992 = vmatpush1.msra.mxu0 0.0
    %993 = vmatprep.subr.mxu0 0.0
    %994 = vmatpush1.msra.mxu0 0.0
    %995 = vmatprep.subr.mxu0 0.0
    %996 = vmatpush1.msra.mxu0 0.0
    %997 = vmatprep.subr.mxu0 0.0
    %998 = vmatpush1.msra.mxu0 0.0
    %999 = vmatprep.subr.mxu0 0.0
    %1000 = vmatpush1.msra.mxu0 0.0
    %1001 = vmatprep.subr.mxu0 0.0
    %1002 = vmatpush1.msra.mxu0 0.0
    %1003 = vmatprep.subr.mxu0 0.0
    %1004 = vmatpush1.msra.mxu0 0.0
    %1005 = vmatprep.subr.mxu0 0.0
    %1006 = vmatpush1.msra.mxu0 0.0
    %1007 = vmatprep.subr.mxu0 0.0
    %1008 = vmatpush1.msra.mxu0 0.0
    %1009 = vmatprep.subr.mxu0 0.0
    %1010 = vmatpush1.msra.mxu0 0.0
    %1011 = vmatprep.subr.mxu0 0.0
    %1012 = vmatpush1.msra.mxu0 0.0
    %1013 = vmatprep.subr.mxu0 0.0
    %1014 = vmatpush1.msra.mxu0 0.0
    %1015 = vmatprep.subr.mxu0 0.0
    %1016 = vmatpush1.msra.mxu0 0.0
    %1017 = vmatprep.subr.mxu0 0.0
    %1018 = vmatpush1.msra.mxu0 0.0
    %1019 = vmatprep.subr.mxu0 0.0
    %1020 = vmatpush1.msra.mxu0 0.0
    %1021 = vmatprep.subr.mxu0 0.0
    %1022 = vmatpush1.msra.mxu0 0.0
    %1023 = vmatprep.subr.mxu0 0.0
    %1024 = vmatpush1.msra.mxu0 0.0
    %1025 = vmatprep.subr.mxu0 0.0
    %1026 = vmatpush1.msra.mxu0 0.0
    %1027 = vmatprep.subr.mxu0 0.0
    %1028 = vmatpush1.msra.mxu0 0.0
    %1029 = vmatprep.subr.mxu0 0.0
    %1030 = vmatpush1.msra.mxu0 0.0
    %1031 = vmatprep.mubr.f32.mxu0 0.0
    %v1032 = vand.u32 %v551, 4294901760
    %1033 = vmatmul.mubr.f32.gmra.mrb[0].mxu0 %v1032
    %v1034 = vpop.f32.mrb[0].mxu0
    %v1035 = vadd.f32 %v960, %v1034
    %v1036 = vpop.f32.mrb[0].mxu0
    %1037 = vdwg.mxu0
    %v1038 = vmax.f32 %v1035, 0.0
    %v1039 = vld [vmem:[#allocation8] sm:$0xff]
    %v1040 = vld [vmem:[#allocation8 + $0x8] sm:$0xff]
    %v1041 = vld [vmem:[#allocation8 + $0x10] sm:$0xff]
    %v1042 = vld [vmem:[#allocation8 + $0x18] sm:$0xff]
    %v1043 = vld [vmem:[#allocation8 + $0x20] sm:$0xff]
    %v1044 = vld [vmem:[#allocation8 + $0x28] sm:$0xff]
    %v1045 = vld [vmem:[#allocation8 + $0x30] sm:$0xff]
    %v1046 = vld [vmem:[#allocation8 + $0x38] sm:$0xff]
    %v1047 = vld [vmem:[#allocation8 + $0x40] sm:$0xff]
    %v1048 = vld [vmem:[#allocation8 + $0x48] sm:$0xff]
    %v1049 = vld [vmem:[#allocation8 + $0x50] sm:$0xff]
    %v1050 = vld [vmem:[#allocation8 + $0x58] sm:$0xff]
    %v1051 = vld [vmem:[#allocation8 + $0x60] sm:$0xff]
    %v1052 = vld [vmem:[#allocation8 + $0x68] sm:$0xff]
    %v1053 = vld [vmem:[#allocation8 + $0x70] sm:$0xff]
    %v1054 = vld [vmem:[#allocation8 + $0x78] sm:$0xff]
    %v1055 = vld [vmem:[%s6] sm:$0x3]
    %v1057 = vlaneseq
    %v1058 = vshrl.u32 %v1057, 7
    %v1059 = vsub.s32 0, %v1058
    %v1060 = vrot.slane %v1055, %v1059
    %v1061 = vlaneseq
    %v1062 = vshrl.u32 %v1061, 7
    %v1063 = vsub.s32 1, %v1062
    %v1064 = vrot.slane %v1055, %v1063
    %vm1067 = vcmask 523264
    %v1069 = vsel %vm1067, %v1038, 0
    %v1071 = vand.u32 %v1040, 4294901760
    %1072 = vmatprep.subr.mxu0 %v1071
    %v1073 = vand.u32 %v1039, 4294901760
    %1074 = vmatpush1.msra.mxu0 %v1073
    %v1075 = vand.u32 %v1042, 4294901760
    %1076 = vmatprep.subr.mxu0 %v1075
    %v1077 = vand.u32 %v1041, 4294901760
    %1078 = vmatpush1.msra.mxu0 %v1077
    %v1079 = vand.u32 %v1044, 4294901760
    %1080 = vmatprep.subr.mxu0 %v1079
    %v1081 = vand.u32 %v1043, 4294901760
    %1082 = vmatpush1.msra.mxu0 %v1081
    %v1083 = vand.u32 %v1046, 4294901760
    %1084 = vmatprep.subr.mxu0 %v1083
    %v1085 = vand.u32 %v1045, 4294901760
    %1086 = vmatpush1.msra.mxu0 %v1085
    %v1087 = vand.u32 %v1048, 4294901760
    %1088 = vmatprep.subr.mxu0 %v1087
    %v1089 = vand.u32 %v1047, 4294901760
    %1090 = vmatpush1.msra.mxu0 %v1089
    %v1091 = vand.u32 %v1050, 4294901760
    %1092 = vmatprep.subr.mxu0 %v1091
    %v1093 = vand.u32 %v1049, 4294901760
    %1094 = vmatpush1.msra.mxu0 %v1093
    %v1095 = vand.u32 %v1052, 4294901760
    %1096 = vmatprep.subr.mxu0 %v1095
    %v1097 = vand.u32 %v1051, 4294901760
    %1098 = vmatpush1.msra.mxu0 %v1097
    %v1099 = vand.u32 %v1054, 4294901760
    %1100 = vmatprep.subr.mxu0 %v1099
    %v1101 = vand.u32 %v1053, 4294901760
    %1102 = vmatpush1.msra.mxu0 %v1101
    %1103 = vmatprep.subr.mxu0 0.0
    %1104 = vmatpush1.msra.mxu0 0.0
    %1105 = vmatprep.subr.mxu0 0.0
    %1106 = vmatpush1.msra.mxu0 0.0
    %1107 = vmatprep.subr.mxu0 0.0
    %1108 = vmatpush1.msra.mxu0 0.0
    %1109 = vmatprep.subr.mxu0 0.0
    %1110 = vmatpush1.msra.mxu0 0.0
    %1111 = vmatprep.subr.mxu0 0.0
    %1112 = vmatpush1.msra.mxu0 0.0
    %1113 = vmatprep.subr.mxu0 0.0
    %1114 = vmatpush1.msra.mxu0 0.0
    %1115 = vmatprep.subr.mxu0 0.0
    %1116 = vmatpush1.msra.mxu0 0.0
    %1117 = vmatprep.subr.mxu0 0.0
    %1118 = vmatpush1.msra.mxu0 0.0
    %1119 = vmatprep.subr.mxu0 0.0
    %1120 = vmatpush1.msra.mxu0 0.0
    %1121 = vmatprep.subr.mxu0 0.0
    %1122 = vmatpush1.msra.mxu0 0.0
    %1123 = vmatprep.subr.mxu0 0.0
    %1124 = vmatpush1.msra.mxu0 0.0
    %1125 = vmatprep.subr.mxu0 0.0
    %1126 = vmatpush1.msra.mxu0 0.0
    %1127 = vmatprep.subr.mxu0 0.0
    %1128 = vmatpush1.msra.mxu0 0.0
    %1129 = vmatprep.subr.mxu0 0.0
    %1130 = vmatpush1.msra.mxu0 0.0
    %1131 = vmatprep.subr.mxu0 0.0
    %1132 = vmatpush1.msra.mxu0 0.0
    %1133 = vmatprep.subr.mxu0 0.0
    %1134 = vmatpush1.msra.mxu0 0.0
    %1135 = vmatprep.subr.mxu0 0.0
    %1136 = vmatpush1.msra.mxu0 0.0
    %1137 = vmatprep.subr.mxu0 0.0
    %1138 = vmatpush1.msra.mxu0 0.0
    %1139 = vmatprep.subr.mxu0 0.0
    %1140 = vmatpush1.msra.mxu0 0.0
    %1141 = vmatprep.subr.mxu0 0.0
    %1142 = vmatpush1.msra.mxu0 0.0
    %1143 = vmatprep.subr.mxu0 0.0
    %1144 = vmatpush1.msra.mxu0 0.0
    %1145 = vmatprep.subr.mxu0 0.0
    %1146 = vmatpush1.msra.mxu0 0.0
    %1147 = vmatprep.subr.mxu0 0.0
    %1148 = vmatpush1.msra.mxu0 0.0
    %1149 = vmatprep.subr.mxu0 0.0
    %1150 = vmatpush1.msra.mxu0 0.0
    %1151 = vmatprep.mubr.f32.mxu0 0.0
    %v1152 = vand.u32 %v1069, 4294901760
    %v1153 = vsub.f32 %v1069, %v1152
    %v1154 = vand.u32 %v1153, 4294901760
    %v1155 = vsub.f32 %v1153, %v1154
    %v1156 = vand.u32 %v1155, 4294901760
    %1157 = vmatmul.mubr.f32.gmra.mrb[0].mxu0 %v1156
    %v1158 = vpop.f32.mrb[0].mxu0
    %v1159 = vadd.f32 %v1060, %v1158
    %v1160 = vpop.f32.mrb[0].mxu0
    %v1161 = vadd.f32 %v1064, %v1160
    %1162 = vdwg.mxu0
    %v1163 = vand.u32 %v1040, 4294901760
    %v1164 = vsub.f32 %v1040, %v1163
    %v1165 = vand.u32 %v1164, 4294901760
    %v1166 = vsub.f32 %v1164, %v1165
    %v1167 = vand.u32 %v1166, 4294901760
    %1168 = vmatprep.subr.mxu0 %v1167
    %v1169 = vand.u32 %v1039, 4294901760
    %v1170 = vsub.f32 %v1039, %v1169
    %v1171 = vand.u32 %v1170, 4294901760
    %v1172 = vsub.f32 %v1170, %v1171
    %v1173 = vand.u32 %v1172, 4294901760
    %1174 = vmatpush1.msra.mxu0 %v1173
    %v1175 = vand.u32 %v1042, 4294901760
    %v1176 = vsub.f32 %v1042, %v1175
    %v1177 = vand.u32 %v1176, 4294901760
    %v1178 = vsub.f32 %v1176, %v1177
    %v1179 = vand.u32 %v1178, 4294901760
    %1180 = vmatprep.subr.mxu0 %v1179
    %v1181 = vand.u32 %v1041, 4294901760
    %v1182 = vsub.f32 %v1041, %v1181
    %v1183 = vand.u32 %v1182, 4294901760
    %v1184 = vsub.f32 %v1182, %v1183
    %v1185 = vand.u32 %v1184, 4294901760
    %1186 = vmatpush1.msra.mxu0 %v1185
    %v1187 = vand.u32 %v1044, 4294901760
    %v1188 = vsub.f32 %v1044, %v1187
    %v1189 = vand.u32 %v1188, 4294901760
    %v1190 = vsub.f32 %v1188, %v1189
    %v1191 = vand.u32 %v1190, 4294901760
    %1192 = vmatprep.subr.mxu0 %v1191
    %v1193 = vand.u32 %v1043, 4294901760
    %v1194 = vsub.f32 %v1043, %v1193
    %v1195 = vand.u32 %v1194, 4294901760
    %v1196 = vsub.f32 %v1194, %v1195
    %v1197 = vand.u32 %v1196, 4294901760
    %1198 = vmatpush1.msra.mxu0 %v1197
    %v1199 = vand.u32 %v1046, 4294901760
    %v1200 = vsub.f32 %v1046, %v1199
    %v1201 = vand.u32 %v1200, 4294901760
    %v1202 = vsub.f32 %v1200, %v1201
    %v1203 = vand.u32 %v1202, 4294901760
    %1204 = vmatprep.subr.mxu0 %v1203
    %v1205 = vand.u32 %v1045, 4294901760
    %v1206 = vsub.f32 %v1045, %v1205
    %v1207 = vand.u32 %v1206, 4294901760
    %v1208 = vsub.f32 %v1206, %v1207
    %v1209 = vand.u32 %v1208, 4294901760
    %1210 = vmatpush1.msra.mxu0 %v1209
    %v1211 = vand.u32 %v1048, 4294901760
    %v1212 = vsub.f32 %v1048, %v1211
    %v1213 = vand.u32 %v1212, 4294901760
    %v1214 = vsub.f32 %v1212, %v1213
    %v1215 = vand.u32 %v1214, 4294901760
    %1216 = vmatprep.subr.mxu0 %v1215
    %v1217 = vand.u32 %v1047, 4294901760
    %v1218 = vsub.f32 %v1047, %v1217
    %v1219 = vand.u32 %v1218, 4294901760
    %v1220 = vsub.f32 %v1218, %v1219
    %v1221 = vand.u32 %v1220, 4294901760
    %1222 = vmatpush1.msra.mxu0 %v1221
    %v1223 = vand.u32 %v1050, 4294901760
    %v1224 = vsub.f32 %v1050, %v1223
    %v1225 = vand.u32 %v1224, 4294901760
    %v1226 = vsub.f32 %v1224, %v1225
    %v1227 = vand.u32 %v1226, 4294901760
    %1228 = vmatprep.subr.mxu0 %v1227
    %v1229 = vand.u32 %v1049, 4294901760
    %v1230 = vsub.f32 %v1049, %v1229
    %v1231 = vand.u32 %v1230, 4294901760
    %v1232 = vsub.f32 %v1230, %v1231
    %v1233 = vand.u32 %v1232, 4294901760
    %1234 = vmatpush1.msra.mxu0 %v1233
    %v1235 = vand.u32 %v1052, 4294901760
    %v1236 = vsub.f32 %v1052, %v1235
    %v1237 = vand.u32 %v1236, 4294901760
    %v1238 = vsub.f32 %v1236, %v1237
    %v1239 = vand.u32 %v1238, 4294901760
    %1240 = vmatprep.subr.mxu0 %v1239
    %v1241 = vand.u32 %v1051, 4294901760
    %v1242 = vsub.f32 %v1051, %v1241
    %v1243 = vand.u32 %v1242, 4294901760
    %v1244 = vsub.f32 %v1242, %v1243
    %v1245 = vand.u32 %v1244, 4294901760
    %1246 = vmatpush1.msra.mxu0 %v1245
    %v1247 = vand.u32 %v1054, 4294901760
    %v1248 = vsub.f32 %v1054, %v1247
    %v1249 = vand.u32 %v1248, 4294901760
    %v1250 = vsub.f32 %v1248, %v1249
    %v1251 = vand.u32 %v1250, 4294901760
    %1252 = vmatprep.subr.mxu0 %v1251
    %v1253 = vand.u32 %v1053, 4294901760
    %v1254 = vsub.f32 %v1053, %v1253
    %v1255 = vand.u32 %v1254, 4294901760
    %v1256 = vsub.f32 %v1254, %v1255
    %v1257 = vand.u32 %v1256, 4294901760
    %1258 = vmatpush1.msra.mxu0 %v1257
    %1259 = vmatprep.subr.mxu0 0.0
    %1260 = vmatpush1.msra.mxu0 0.0
    %1261 = vmatprep.subr.mxu0 0.0
    %1262 = vmatpush1.msra.mxu0 0.0
    %1263 = vmatprep.subr.mxu0 0.0
    %1264 = vmatpush1.msra.mxu0 0.0
    %1265 = vmatprep.subr.mxu0 0.0
    %1266 = vmatpush1.msra.mxu0 0.0
    %1267 = vmatprep.subr.mxu0 0.0
    %1268 = vmatpush1.msra.mxu0 0.0
    %1269 = vmatprep.subr.mxu0 0.0
    %1270 = vmatpush1.msra.mxu0 0.0
    %1271 = vmatprep.subr.mxu0 0.0
    %1272 = vmatpush1.msra.mxu0 0.0
    %1273 = vmatprep.subr.mxu0 0.0
    %1274 = vmatpush1.msra.mxu0 0.0
    %1275 = vmatprep.subr.mxu0 0.0
    %1276 = vmatpush1.msra.mxu0 0.0
    %1277 = vmatprep.subr.mxu0 0.0
    %1278 = vmatpush1.msra.mxu0 0.0
    %1279 = vmatprep.subr.mxu0 0.0
    %1280 = vmatpush1.msra.mxu0 0.0
    %1281 = vmatprep.subr.mxu0 0.0
    %1282 = vmatpush1.msra.mxu0 0.0
    %1283 = vmatprep.subr.mxu0 0.0
    %1284 = vmatpush1.msra.mxu0 0.0
    %1285 = vmatprep.subr.mxu0 0.0
    %1286 = vmatpush1.msra.mxu0 0.0
    %1287 = vmatprep.subr.mxu0 0.0
    %1288 = vmatpush1.msra.mxu0 0.0
    %1289 = vmatprep.subr.mxu0 0.0
    %1290 = vmatpush1.msra.mxu0 0.0
    %1291 = vmatprep.subr.mxu0 0.0
    %1292 = vmatpush1.msra.mxu0 0.0
    %1293 = vmatprep.subr.mxu0 0.0
    %1294 = vmatpush1.msra.mxu0 0.0
    %1295 = vmatprep.subr.mxu0 0.0
    %1296 = vmatpush1.msra.mxu0 0.0
    %1297 = vmatprep.subr.mxu0 0.0
    %1298 = vmatpush1.msra.mxu0 0.0
    %1299 = vmatprep.subr.mxu0 0.0
    %1300 = vmatpush1.msra.mxu0 0.0
    %1301 = vmatprep.subr.mxu0 0.0
    %1302 = vmatpush1.msra.mxu0 0.0
    %1303 = vmatprep.subr.mxu0 0.0
    %1304 = vmatpush1.msra.mxu0 0.0
    %1305 = vmatprep.subr.mxu0 0.0
    %1306 = vmatpush1.msra.mxu0 0.0
    %1307 = vmatprep.mubr.f32.mxu0 0.0
    %v1308 = vand.u32 %v1069, 4294901760
    %1309 = vmatmul.mubr.f32.gmra.mrb[0].mxu0 %v1308
    %v1310 = vpop.f32.mrb[0].mxu0
    %v1311 = vadd.f32 %v1159, %v1310
    %v1312 = vpop.f32.mrb[0].mxu0
    %v1313 = vadd.f32 %v1161, %v1312
    %1314 = vdwg.mxu0
    %v1315 = vand.u32 %v1040, 4294901760
    %v1316 = vsub.f32 %v1040, %v1315
    %1317 = vmatprep.subr.mxu0 %v1316
    %v1318 = vand.u32 %v1039, 4294901760
    %v1319 = vsub.f32 %v1039, %v1318
    %1320 = vmatpush1.msra.mxu0 %v1319
    %v1321 = vand.u32 %v1042, 4294901760
    %v1322 = vsub.f32 %v1042, %v1321
    %1323 = vmatprep.subr.mxu0 %v1322
    %v1324 = vand.u32 %v1041, 4294901760
    %v1325 = vsub.f32 %v1041, %v1324
    %1326 = vmatpush1.msra.mxu0 %v1325
    %v1327 = vand.u32 %v1044, 4294901760
    %v1328 = vsub.f32 %v1044, %v1327
    %1329 = vmatprep.subr.mxu0 %v1328
    %v1330 = vand.u32 %v1043, 4294901760
    %v1331 = vsub.f32 %v1043, %v1330
    %1332 = vmatpush1.msra.mxu0 %v1331
    %v1333 = vand.u32 %v1046, 4294901760
    %v1334 = vsub.f32 %v1046, %v1333
    %1335 = vmatprep.subr.mxu0 %v1334
    %v1336 = vand.u32 %v1045, 4294901760
    %v1337 = vsub.f32 %v1045, %v1336
    %1338 = vmatpush1.msra.mxu0 %v1337
    %v1339 = vand.u32 %v1048, 4294901760
    %v1340 = vsub.f32 %v1048, %v1339
    %1341 = vmatprep.subr.mxu0 %v1340
    %v1342 = vand.u32 %v1047, 4294901760
    %v1343 = vsub.f32 %v1047, %v1342
    %1344 = vmatpush1.msra.mxu0 %v1343
    %v1345 = vand.u32 %v1050, 4294901760
    %v1346 = vsub.f32 %v1050, %v1345
    %1347 = vmatprep.subr.mxu0 %v1346
    %v1348 = vand.u32 %v1049, 4294901760
    %v1349 = vsub.f32 %v1049, %v1348
    %1350 = vmatpush1.msra.mxu0 %v1349
    %v1351 = vand.u32 %v1052, 4294901760
    %v1352 = vsub.f32 %v1052, %v1351
    %1353 = vmatprep.subr.mxu0 %v1352
    %v1354 = vand.u32 %v1051, 4294901760
    %v1355 = vsub.f32 %v1051, %v1354
    %1356 = vmatpush1.msra.mxu0 %v1355
    %v1357 = vand.u32 %v1054, 4294901760
    %v1358 = vsub.f32 %v1054, %v1357
    %1359 = vmatprep.subr.mxu0 %v1358
    %v1360 = vand.u32 %v1053, 4294901760
    %v1361 = vsub.f32 %v1053, %v1360
    %1362 = vmatpush1.msra.mxu0 %v1361
    %1363 = vmatprep.subr.mxu0 0.0
    %1364 = vmatpush1.msra.mxu0 0.0
    %1365 = vmatprep.subr.mxu0 0.0
    %1366 = vmatpush1.msra.mxu0 0.0
    %1367 = vmatprep.subr.mxu0 0.0
    %1368 = vmatpush1.msra.mxu0 0.0
    %1369 = vmatprep.subr.mxu0 0.0
    %1370 = vmatpush1.msra.mxu0 0.0
    %1371 = vmatprep.subr.mxu0 0.0
    %1372 = vmatpush1.msra.mxu0 0.0
    %1373 = vmatprep.subr.mxu0 0.0
    %1374 = vmatpush1.msra.mxu0 0.0
    %1375 = vmatprep.subr.mxu0 0.0
    %1376 = vmatpush1.msra.mxu0 0.0
    %1377 = vmatprep.subr.mxu0 0.0
    %1378 = vmatpush1.msra.mxu0 0.0
    %1379 = vmatprep.subr.mxu0 0.0
    %1380 = vmatpush1.msra.mxu0 0.0
    %1381 = vmatprep.subr.mxu0 0.0
    %1382 = vmatpush1.msra.mxu0 0.0
    %1383 = vmatprep.subr.mxu0 0.0
    %1384 = vmatpush1.msra.mxu0 0.0
    %1385 = vmatprep.subr.mxu0 0.0
    %1386 = vmatpush1.msra.mxu0 0.0
    %1387 = vmatprep.subr.mxu0 0.0
    %1388 = vmatpush1.msra.mxu0 0.0
    %1389 = vmatprep.subr.mxu0 0.0
    %1390 = vmatpush1.msra.mxu0 0.0
    %1391 = vmatprep.subr.mxu0 0.0
    %1392 = vmatpush1.msra.mxu0 0.0
    %1393 = vmatprep.subr.mxu0 0.0
    %1394 = vmatpush1.msra.mxu0 0.0
    %1395 = vmatprep.subr.mxu0 0.0
    %1396 = vmatpush1.msra.mxu0 0.0
    %1397 = vmatprep.subr.mxu0 0.0
    %1398 = vmatpush1.msra.mxu0 0.0
    %1399 = vmatprep.subr.mxu0 0.0
    %1400 = vmatpush1.msra.mxu0 0.0
    %1401 = vmatprep.subr.mxu0 0.0
    %1402 = vmatpush1.msra.mxu0 0.0
    %1403 = vmatprep.subr.mxu0 0.0
    %1404 = vmatpush1.msra.mxu0 0.0
    %1405 = vmatprep.subr.mxu0 0.0
    %1406 = vmatpush1.msra.mxu0 0.0
    %1407 = vmatprep.subr.mxu0 0.0
    %1408 = vmatpush1.msra.mxu0 0.0
    %1409 = vmatprep.subr.mxu0 0.0
    %1410 = vmatpush1.msra.mxu0 0.0
    %1411 = vmatprep.mubr.f32.mxu0 0.0
    %v1412 = vand.u32 %v1069, 4294901760
    %v1413 = vsub.f32 %v1069, %v1412
    %1414 = vmatmul.mubr.f32.gmra.mrb[0].mxu0 %v1413
    %v1415 = vpop.f32.mrb[0].mxu0
    %v1416 = vadd.f32 %v1311, %v1415
    %v1417 = vpop.f32.mrb[0].mxu0
    %v1418 = vadd.f32 %v1313, %v1417
    %1419 = vdwg.mxu0
    %v1420 = vand.u32 %v1040, 4294901760
    %1421 = vmatprep.subr.mxu0 %v1420
    %v1422 = vand.u32 %v1039, 4294901760
    %1423 = vmatpush1.msra.mxu0 %v1422
    %v1424 = vand.u32 %v1042, 4294901760
    %1425 = vmatprep.subr.mxu0 %v1424
    %v1426 = vand.u32 %v1041, 4294901760
    %1427 = vmatpush1.msra.mxu0 %v1426
    %v1428 = vand.u32 %v1044, 4294901760
    %1429 = vmatprep.subr.mxu0 %v1428
    %v1430 = vand.u32 %v1043, 4294901760
    %1431 = vmatpush1.msra.mxu0 %v1430
    %v1432 = vand.u32 %v1046, 4294901760
    %1433 = vmatprep.subr.mxu0 %v1432
    %v1434 = vand.u32 %v1045, 4294901760
    %1435 = vmatpush1.msra.mxu0 %v1434
    %v1436 = vand.u32 %v1048, 4294901760
    %1437 = vmatprep.subr.mxu0 %v1436
    %v1438 = vand.u32 %v1047, 4294901760
    %1439 = vmatpush1.msra.mxu0 %v1438
    %v1440 = vand.u32 %v1050, 4294901760
    %1441 = vmatprep.subr.mxu0 %v1440
    %v1442 = vand.u32 %v1049, 4294901760
    %1443 = vmatpush1.msra.mxu0 %v1442
    %v1444 = vand.u32 %v1052, 4294901760
    %1445 = vmatprep.subr.mxu0 %v1444
    %v1446 = vand.u32 %v1051, 4294901760
    %1447 = vmatpush1.msra.mxu0 %v1446
    %v1448 = vand.u32 %v1054, 4294901760
    %1449 = vmatprep.subr.mxu0 %v1448
    %v1450 = vand.u32 %v1053, 4294901760
    %1451 = vmatpush1.msra.mxu0 %v1450
    %1452 = vmatprep.subr.mxu0 0.0
    %1453 = vmatpush1.msra.mxu0 0.0
    %1454 = vmatprep.subr.mxu0 0.0
    %1455 = vmatpush1.msra.mxu0 0.0
    %1456 = vmatprep.subr.mxu0 0.0
    %1457 = vmatpush1.msra.mxu0 0.0
    %1458 = vmatprep.subr.mxu0 0.0
    %1459 = vmatpush1.msra.mxu0 0.0
    %1460 = vmatprep.subr.mxu0 0.0
    %1461 = vmatpush1.msra.mxu0 0.0
    %1462 = vmatprep.subr.mxu0 0.0
    %1463 = vmatpush1.msra.mxu0 0.0
    %1464 = vmatprep.subr.mxu0 0.0
    %1465 = vmatpush1.msra.mxu0 0.0
    %1466 = vmatprep.subr.mxu0 0.0
    %1467 = vmatpush1.msra.mxu0 0.0
    %1468 = vmatprep.subr.mxu0 0.0
    %1469 = vmatpush1.msra.mxu0 0.0
    %1470 = vmatprep.subr.mxu0 0.0
    %1471 = vmatpush1.msra.mxu0 0.0
    %1472 = vmatprep.subr.mxu0 0.0
    %1473 = vmatpush1.msra.mxu0 0.0
    %1474 = vmatprep.subr.mxu0 0.0
    %1475 = vmatpush1.msra.mxu0 0.0
    %1476 = vmatprep.subr.mxu0 0.0
    %1477 = vmatpush1.msra.mxu0 0.0
    %1478 = vmatprep.subr.mxu0 0.0
    %1479 = vmatpush1.msra.mxu0 0.0
    %1480 = vmatprep.subr.mxu0 0.0
    %1481 = vmatpush1.msra.mxu0 0.0
    %1482 = vmatprep.subr.mxu0 0.0
    %1483 = vmatpush1.msra.mxu0 0.0
    %1484 = vmatprep.subr.mxu0 0.0
    %1485 = vmatpush1.msra.mxu0 0.0
    %1486 = vmatprep.subr.mxu0 0.0
    %1487 = vmatpush1.msra.mxu0 0.0
    %1488 = vmatprep.subr.mxu0 0.0
    %1489 = vmatpush1.msra.mxu0 0.0
    %1490 = vmatprep.subr.mxu0 0.0
    %1491 = vmatpush1.msra.mxu0 0.0
    %1492 = vmatprep.subr.mxu0 0.0
    %1493 = vmatpush1.msra.mxu0 0.0
    %1494 = vmatprep.subr.mxu0 0.0
    %1495 = vmatpush1.msra.mxu0 0.0
    %1496 = vmatprep.subr.mxu0 0.0
    %1497 = vmatpush1.msra.mxu0 0.0
    %1498 = vmatprep.subr.mxu0 0.0
    %1499 = vmatpush1.msra.mxu0 0.0
    %1500 = vmatprep.mubr.f32.mxu0 0.0
    %v1501 = vand.u32 %v1069, 4294901760
    %v1502 = vsub.f32 %v1069, %v1501
    %v1503 = vand.u32 %v1502, 4294901760
    %1504 = vmatmul.mubr.f32.gmra.mrb[0].mxu0 %v1503
    %v1505 = vpop.f32.mrb[0].mxu0
    %v1506 = vadd.f32 %v1416, %v1505
    %v1507 = vpop.f32.mrb[0].mxu0
    %v1508 = vadd.f32 %v1418, %v1507
    %1509 = vdwg.mxu0
    %v1510 = vand.u32 %v1040, 4294901760
    %v1511 = vsub.f32 %v1040, %v1510
    %v1512 = vand.u32 %v1511, 4294901760
    %1513 = vmatprep.subr.mxu0 %v1512
    %v1514 = vand.u32 %v1039, 4294901760
    %v1515 = vsub.f32 %v1039, %v1514
    %v1516 = vand.u32 %v1515, 4294901760
    %1517 = vmatpush1.msra.mxu0 %v1516
    %v1518 = vand.u32 %v1042, 4294901760
    %v1519 = vsub.f32 %v1042, %v1518
    %v1520 = vand.u32 %v1519, 4294901760
    %1521 = vmatprep.subr.mxu0 %v1520
    %v1522 = vand.u32 %v1041, 4294901760
    %v1523 = vsub.f32 %v1041, %v1522
    %v1524 = vand.u32 %v1523, 4294901760
    %1525 = vmatpush1.msra.mxu0 %v1524
    %v1526 = vand.u32 %v1044, 4294901760
    %v1527 = vsub.f32 %v1044, %v1526
    %v1528 = vand.u32 %v1527, 4294901760
    %1529 = vmatprep.subr.mxu0 %v1528
    %v1530 = vand.u32 %v1043, 4294901760
    %v1531 = vsub.f32 %v1043, %v1530
    %v1532 = vand.u32 %v1531, 4294901760
    %1533 = vmatpush1.msra.mxu0 %v1532
    %v1534 = vand.u32 %v1046, 4294901760
    %v1535 = vsub.f32 %v1046, %v1534
    %v1536 = vand.u32 %v1535, 4294901760
    %1537 = vmatprep.subr.mxu0 %v1536
    %v1538 = vand.u32 %v1045, 4294901760
    %v1539 = vsub.f32 %v1045, %v1538
    %v1540 = vand.u32 %v1539, 4294901760
    %1541 = vmatpush1.msra.mxu0 %v1540
    %v1542 = vand.u32 %v1048, 4294901760
    %v1543 = vsub.f32 %v1048, %v1542
    %v1544 = vand.u32 %v1543, 4294901760
    %1545 = vmatprep.subr.mxu0 %v1544
    %v1546 = vand.u32 %v1047, 4294901760
    %v1547 = vsub.f32 %v1047, %v1546
    %v1548 = vand.u32 %v1547, 4294901760
    %1549 = vmatpush1.msra.mxu0 %v1548
    %v1550 = vand.u32 %v1050, 4294901760
    %v1551 = vsub.f32 %v1050, %v1550
    %v1552 = vand.u32 %v1551, 4294901760
    %1553 = vmatprep.subr.mxu0 %v1552
    %v1554 = vand.u32 %v1049, 4294901760
    %v1555 = vsub.f32 %v1049, %v1554
    %v1556 = vand.u32 %v1555, 4294901760
    %1557 = vmatpush1.msra.mxu0 %v1556
    %v1558 = vand.u32 %v1052, 4294901760
    %v1559 = vsub.f32 %v1052, %v1558
    %v1560 = vand.u32 %v1559, 4294901760
    %1561 = vmatprep.subr.mxu0 %v1560
    %v1562 = vand.u32 %v1051, 4294901760
    %v1563 = vsub.f32 %v1051, %v1562
    %v1564 = vand.u32 %v1563, 4294901760
    %1565 = vmatpush1.msra.mxu0 %v1564
    %v1566 = vand.u32 %v1054, 4294901760
    %v1567 = vsub.f32 %v1054, %v1566
    %v1568 = vand.u32 %v1567, 4294901760
    %1569 = vmatprep.subr.mxu0 %v1568
    %v1570 = vand.u32 %v1053, 4294901760
    %v1571 = vsub.f32 %v1053, %v1570
    %v1572 = vand.u32 %v1571, 4294901760
    %1573 = vmatpush1.msra.mxu0 %v1572
    %1574 = vmatprep.subr.mxu0 0.0
    %1575 = vmatpush1.msra.mxu0 0.0
    %1576 = vmatprep.subr.mxu0 0.0
    %1577 = vmatpush1.msra.mxu0 0.0
    %1578 = vmatprep.subr.mxu0 0.0
    %1579 = vmatpush1.msra.mxu0 0.0
    %1580 = vmatprep.subr.mxu0 0.0
    %1581 = vmatpush1.msra.mxu0 0.0
    %1582 = vmatprep.subr.mxu0 0.0
    %1583 = vmatpush1.msra.mxu0 0.0
    %1584 = vmatprep.subr.mxu0 0.0
    %1585 = vmatpush1.msra.mxu0 0.0
    %1586 = vmatprep.subr.mxu0 0.0
    %1587 = vmatpush1.msra.mxu0 0.0
    %1588 = vmatprep.subr.mxu0 0.0
    %1589 = vmatpush1.msra.mxu0 0.0
    %1590 = vmatprep.subr.mxu0 0.0
    %1591 = vmatpush1.msra.mxu0 0.0
    %1592 = vmatprep.subr.mxu0 0.0
    %1593 = vmatpush1.msra.mxu0 0.0
    %1594 = vmatprep.subr.mxu0 0.0
    %1595 = vmatpush1.msra.mxu0 0.0
    %1596 = vmatprep.subr.mxu0 0.0
    %1597 = vmatpush1.msra.mxu0 0.0
    %1598 = vmatprep.subr.mxu0 0.0
    %1599 = vmatpush1.msra.mxu0 0.0
    %1600 = vmatprep.subr.mxu0 0.0
    %1601 = vmatpush1.msra.mxu0 0.0
    %1602 = vmatprep.subr.mxu0 0.0
    %1603 = vmatpush1.msra.mxu0 0.0
    %1604 = vmatprep.subr.mxu0 0.0
    %1605 = vmatpush1.msra.mxu0 0.0
    %1606 = vmatprep.subr.mxu0 0.0
    %1607 = vmatpush1.msra.mxu0 0.0
    %1608 = vmatprep.subr.mxu0 0.0
    %1609 = vmatpush1.msra.mxu0 0.0
    %1610 = vmatprep.subr.mxu0 0.0
    %1611 = vmatpush1.msra.mxu0 0.0
    %1612 = vmatprep.subr.mxu0 0.0
    %1613 = vmatpush1.msra.mxu0 0.0
    %1614 = vmatprep.subr.mxu0 0.0
    %1615 = vmatpush1.msra.mxu0 0.0
    %1616 = vmatprep.subr.mxu0 0.0
    %1617 = vmatpush1.msra.mxu0 0.0
    %1618 = vmatprep.subr.mxu0 0.0
    %1619 = vmatpush1.msra.mxu0 0.0
    %1620 = vmatprep.subr.mxu0 0.0
    %1621 = vmatpush1.msra.mxu0 0.0
    %1622 = vmatprep.mubr.f32.mxu0 0.0
    %v1623 = vand.u32 %v1069, 4294901760
    %1624 = vmatmul.mubr.f32.gmra.mrb[0].mxu0 %v1623
    %v1625 = vpop.f32.mrb[0].mxu0
    %v1626 = vadd.f32 %v1506, %v1625
    %v1627 = vpop.f32.mrb[0].mxu0
    %v1628 = vadd.f32 %v1508, %v1627
    %1629 = vdwg.mxu0
    %v1630 = vand.u32 %v1040, 4294901760
    %1631 = vmatprep.subr.mxu0 %v1630
    %v1632 = vand.u32 %v1039, 4294901760
    %1633 = vmatpush1.msra.mxu0 %v1632
    %v1634 = vand.u32 %v1042, 4294901760
    %1635 = vmatprep.subr.mxu0 %v1634
    %v1636 = vand.u32 %v1041, 4294901760
    %1637 = vmatpush1.msra.mxu0 %v1636
    %v1638 = vand.u32 %v1044, 4294901760
    %1639 = vmatprep.subr.mxu0 %v1638
    %v1640 = vand.u32 %v1043, 4294901760
    %1641 = vmatpush1.msra.mxu0 %v1640
    %v1642 = vand.u32 %v1046, 4294901760
    %1643 = vmatprep.subr.mxu0 %v1642
    %v1644 = vand.u32 %v1045, 4294901760
    %1645 = vmatpush1.msra.mxu0 %v1644
    %v1646 = vand.u32 %v1048, 4294901760
    %1647 = vmatprep.subr.mxu0 %v1646
    %v1648 = vand.u32 %v1047, 4294901760
    %1649 = vmatpush1.msra.mxu0 %v1648
    %v1650 = vand.u32 %v1050, 4294901760
    %1651 = vmatprep.subr.mxu0 %v1650
    %v1652 = vand.u32 %v1049, 4294901760
    %1653 = vmatpush1.msra.mxu0 %v1652
    %v1654 = vand.u32 %v1052, 4294901760
    %1655 = vmatprep.subr.mxu0 %v1654
    %v1656 = vand.u32 %v1051, 4294901760
    %1657 = vmatpush1.msra.mxu0 %v1656
    %v1658 = vand.u32 %v1054, 4294901760
    %1659 = vmatprep.subr.mxu0 %v1658
    %v1660 = vand.u32 %v1053, 4294901760
    %1661 = vmatpush1.msra.mxu0 %v1660
    %1662 = vmatprep.subr.mxu0 0.0
    %1663 = vmatpush1.msra.mxu0 0.0
    %1664 = vmatprep.subr.mxu0 0.0
    %1665 = vmatpush1.msra.mxu0 0.0
    %1666 = vmatprep.subr.mxu0 0.0
    %1667 = vmatpush1.msra.mxu0 0.0
    %1668 = vmatprep.subr.mxu0 0.0
    %1669 = vmatpush1.msra.mxu0 0.0
    %1670 = vmatprep.subr.mxu0 0.0
    %1671 = vmatpush1.msra.mxu0 0.0
    %1672 = vmatprep.subr.mxu0 0.0
    %1673 = vmatpush1.msra.mxu0 0.0
    %1674 = vmatprep.subr.mxu0 0.0
    %1675 = vmatpush1.msra.mxu0 0.0
    %1676 = vmatprep.subr.mxu0 0.0
    %1677 = vmatpush1.msra.mxu0 0.0
    %1678 = vmatprep.subr.mxu0 0.0
    %1679 = vmatpush1.msra.mxu0 0.0
    %1680 = vmatprep.subr.mxu0 0.0
    %1681 = vmatpush1.msra.mxu0 0.0
    %1682 = vmatprep.subr.mxu0 0.0
    %1683 = vmatpush1.msra.mxu0 0.0
    %1684 = vmatprep.subr.mxu0 0.0
    %1685 = vmatpush1.msra.mxu0 0.0
    %1686 = vmatprep.subr.mxu0 0.0
    %1687 = vmatpush1.msra.mxu0 0.0
    %1688 = vmatprep.subr.mxu0 0.0
    %1689 = vmatpush1.msra.mxu0 0.0
    %1690 = vmatprep.subr.mxu0 0.0
    %1691 = vmatpush1.msra.mxu0 0.0
    %1692 = vmatprep.subr.mxu0 0.0
    %1693 = vmatpush1.msra.mxu0 0.0
    %1694 = vmatprep.subr.mxu0 0.0
    %1695 = vmatpush1.msra.mxu0 0.0
    %1696 = vmatprep.subr.mxu0 0.0
    %1697 = vmatpush1.msra.mxu0 0.0
    %1698 = vmatprep.subr.mxu0 0.0
    %1699 = vmatpush1.msra.mxu0 0.0
    %1700 = vmatprep.subr.mxu0 0.0
    %1701 = vmatpush1.msra.mxu0 0.0
    %1702 = vmatprep.subr.mxu0 0.0
    %1703 = vmatpush1.msra.mxu0 0.0
    %1704 = vmatprep.subr.mxu0 0.0
    %1705 = vmatpush1.msra.mxu0 0.0
    %1706 = vmatprep.subr.mxu0 0.0
    %1707 = vmatpush1.msra.mxu0 0.0
    %1708 = vmatprep.subr.mxu0 0.0
    %1709 = vmatpush1.msra.mxu0 0.0
    %1710 = vmatprep.mubr.f32.mxu0 0.0
    %v1711 = vand.u32 %v1069, 4294901760
    %1712 = vmatmul.mubr.f32.gmra.mrb[0].mxu0 %v1711
    %v1713 = vpop.f32.mrb[0].mxu0
    %v1714 = vadd.f32 %v1626, %v1713
    %v1715 = vpop.f32.mrb[0].mxu0
    %v1716 = vadd.f32 %v1628, %v1715
    %1717 = vdwg.mxu0
    %v1720 = vcombine.low %v1714, %v1716
    %v1722 = vunpack.c.l.s4 1983009808
    %v1723 = vunpack.c.0.s8 %v1722
    %v1724 = vlaneseq
    %v1725 = vshrl.u32 %v1724, 7
    %v1726 = vsub.s32 %v1723, %v1725
    %v1727 = vrot.slane %v1720, %v1726
    %vm1729 = vcmask 1041408
    %vm1730 = vcmask 257026
    %vm1731 = vmor %vm1730, %vm1729
    %1732 = vst.msk [vmem:[#allocation10] sm:$0xf] %vm1731, %v1727
    // Predicated region
    $region46: #{tpu_custom_call.1} parent=1 // pred_check
      _
    $region47: #{tpu_custom_call.1} parent=1 // pred_check_branch
      %1734 = sbr.rel (0) target = $region49
    $region48: #{tpu_custom_call.1} parent=1 // pred_region
      %s1736 = ssub.s32 64, 64
      %1737 = vsyncadd [#allocation4], %s1736
      %s1739 = sshll.u32 [#allocation10], 4
      %s1740 = int_to_ptr.vmem [resolvable:$true] %s1739
      %1742 = dma.vmem_to_hbm [thread:$0]  %s1740, 64, %s7, [#allocation4]
    $region49: #{tpu_custom_call.1} parent=1 // pred_fallthru
      _
    // Predicated region
    $region50: #{tpu_custom_call.1} parent=1 // pred_check
      _
    $region51: #{tpu_custom_call.1} parent=1 // pred_check_branch
      %1744 = sbr.rel (0) target = $region53
    $region52: #{tpu_custom_call.1} parent=1 // pred_region
      %1745 = dma.done [#allocation4], 64
    $region53: #{tpu_custom_call.1} parent=1 // pred_fallthru
      _
    %1746 = vsyncpa [#allocation3], 1
    %1747 = vsyncpa [#allocation6], 1
    %1748 = vsyncpa [#allocation9], 1
    %1749 = vsyncpa [#allocation4], 1

</llo_original>
